<compile_context>
chip_gen: v7x
topology: tpu7x:2x2x1
jax: 0.10.0
libtpu: 0.0.40
codegen_flags: <defaults>
</compile_context>

<pallas_src>
import functools

import jax
import jax.numpy as jnp
import numpy as np
from jax.experimental import pallas as pl
from jax.experimental.pallas import tpu as pltpu

BN_EPS = 0.8  # nn.BatchNorm2d(out_filters, 0.8) -> second positional arg is eps


# ----------------------------- Pallas kernel ---------------------------------
def _fused_matmul_kernel(*refs, leaky, bn):
    """y = x @ w + b ; optional LeakyReLU(0.2) ; optional per-column BN affine."""
    if bn:
        x_ref, w_ref, b_ref, s_ref, t_ref, o_ref = refs
    else:
        x_ref, w_ref, b_ref, o_ref = refs
    y = jnp.dot(x_ref[...], w_ref[...], preferred_element_type=jnp.float32)
    y = y + b_ref[...]
    if leaky:
        y = jnp.where(y >= 0.0, y, 0.2 * y)          # LeakyReLU(0.2)
    if bn:
        y = y * s_ref[...] + t_ref[...]              # BatchNorm (running-stats) affine
    o_ref[...] = y


def fused_matmul(x, w, b, scale=None, shift=None, *, leaky,
                 compute_dtype=jnp.bfloat16, tm=512):
    """(M,K) @ (K,N) + b with fused activation/affine.

    Rows (M) are streamed in TM-row tiles over a 1-D "parallel" grid; weights,
    bias and BN vectors stay VMEM-resident.  No HBM padding: K and N use
    full-extent blocks.
    """
    M, K = x.shape
    K2, N = w.shape
    assert K == K2
    bn = scale is not None

    xq = x.astype(compute_dtype)
    wq = w.astype(compute_dtype)
    b2 = b.reshape(1, N).astype(jnp.float32)

    # Full-array block when M is small (also covers M not divisible by 8),
    # otherwise a multiple-of-8 row tile; partial trailing blocks are masked.
    tm_eff = tm if M >= tm else M
    grid = (pl.cdiv(M, tm_eff),)

    in_specs = [
        pl.BlockSpec((tm_eff, K), lambda i: (i, 0)),   # streamed row tiles
        pl.BlockSpec((K, N), lambda i: (0, 0)),        # resident weights
        pl.BlockSpec((1, N), lambda i: (0, 0)),        # resident bias
    ]
    args = [xq, wq, b2]
    if bn:
        in_specs += [pl.BlockSpec((1, N), lambda i: (0, 0)),
                     pl.BlockSpec((1, N), lambda i: (0, 0))]
        args += [scale.reshape(1, N).astype(jnp.float32),
                 shift.reshape(1, N).astype(jnp.float32)]

    return pl.pallas_call(
        functools.partial(_fused_matmul_kernel, leaky=leaky, bn=bn),
        out_shape=jax.ShapeDtypeStruct((M, N), jnp.float32),
        grid=grid,
        in_specs=in_specs,
        out_specs=pl.BlockSpec((tm_eff, N), lambda i: (i, 0)),
        compiler_params=pltpu.CompilerParams(
            dimension_semantics=("parallel",),
            vmem_limit_bytes=48 * 1024 * 1024),
    )(*args)


# ------------------------------ JAX glue --------------------------------------
def im2col_nhwc(x, k=3, stride=2, pad=1):
    """NHWC -> (N*Ho*Wo, k*k*C) patches matching PyTorch Conv2d(k,stride,pad).

    Inner patch order is (kh, kw, cin); pair with w.transpose(2,3,1,0).
    """
    B, H, W, C = x.shape
    xp = jnp.pad(x, ((0, 0), (pad, pad), (pad, pad), (0, 0)))
    Ho = (H + 2 * pad - k) // stride + 1
    Wo = (W + 2 * pad - k) // stride + 1
    cols = []
    for di in range(k):
        for dj in range(k):
            cols.append(xp[:, di:di + stride * Ho:stride,
                           dj:dj + stride * Wo:stride, :])
    patches = jnp.stack(cols, axis=3)              # (B, Ho, Wo, k*k, C)
    return patches.reshape(B * Ho * Wo, k * k * C), Ho, Wo


def init_params(key, in_ch=4, img_size=16):
    chans = [in_ch, 16, 32, 64, 128]
    params = {"convs": []}
    for i in range(4):
        key, k1, k2, k3, k4 = jax.random.split(key, 5)
        cin, cout = chans[i], chans[i + 1]
        params["convs"].append(dict(
            w=0.1 * jax.random.normal(k1, (cout, cin, 3, 3), jnp.float32),
            b=0.1 * jax.random.normal(k2, (cout,), jnp.float32),
            gamma=1.0 + 0.1 * jax.random.normal(k3, (cout,), jnp.float32),
            beta=0.1 * jax.random.normal(k4, (cout,), jnp.float32),
            mean=jnp.zeros((cout,), jnp.float32),
            var=jnp.ones((cout,), jnp.float32),
        ))
    ds = img_size // (2 ** 4)
    key, k1, k2 = jax.random.split(key, 3)
    params["adv_w"] = 0.05 * jax.random.normal(k1, (1, 128 * ds * ds), jnp.float32)
    params["adv_b"] = 0.05 * jax.random.normal(k2, (1,), jnp.float32)
    return params


def discriminator_forward(params, img):
    # TODO(synk): Dropout2d(0.25) is training-only stochastic; eval-mode identity used here.
    x = img.transpose(0, 2, 3, 1)                      # NCHW -> NHWC, once
    for idx, layer in enumerate(params["convs"]):
        B = x.shape[0]
        cout = layer["w"].shape[0]
        patches, Ho, Wo = im2col_nhwc(x)               # (B*Ho*Wo, 9*Cin)
        # (cout, cin, kh, kw) -> (kh, kw, cin, cout) to match (kh, kw, cin) patch order
        w_mat = layer["w"].transpose(2, 3, 1, 0).reshape(-1, cout)
        if idx > 0:                                    # first block has no BN
            scale = layer["gamma"] / jnp.sqrt(layer["var"] + BN_EPS)
            shift = layer["beta"] - layer["mean"] * scale
        else:
            scale = shift = None
        y = fused_matmul(patches, w_mat, layer["b"], scale, shift,
                         leaky=True, compute_dtype=jnp.bfloat16)
        x = y.reshape(B, Ho, Wo, cout)                 # stay NHWC (no transpose)
    # PyTorch flattens NCHW: transpose only the tiny final activation.
    flat = x.transpose(0, 3, 1, 2).reshape(x.shape[0], -1)
    validity = fused_matmul(flat, params["adv_w"].T, params["adv_b"],
                            leaky=False, compute_dtype=jnp.float32)
    return validity                                    # (N, 1)


def reference_forward(params, img):
    """Pure-JAX reference (XLA conv, NCHW, f32) matching the PyTorch module."""
    x = img
    for idx, layer in enumerate(params["convs"]):
        y = jax.lax.conv_general_dilated(
            x, layer["w"], window_strides=(2, 2), padding=((1, 1), (1, 1)),
            dimension_numbers=("NCHW", "OIHW", "NCHW"))
        y = y + layer["b"][None, :, None, None]
        y = jnp.where(y >= 0, y, 0.2 * y)
        if idx > 0:
            scale = layer["gamma"] / jnp.sqrt(layer["var"] + BN_EPS)
            shift = layer["beta"] - layer["mean"] * scale
            y = y * scale[None, :, None, None] + shift[None, :, None, None]
        x = y
    flat = x.reshape(x.shape[0], -1)
    return flat @ params["adv_w"].T + params["adv_b"]


if __name__ == "__main__":
    key = jax.random.PRNGKey(0)
    pkey, xkey = jax.random.split(key)
    params = init_params(pkey, in_ch=4, img_size=16)
    img = jax.random.normal(xkey, (2, 4, 16, 16), jnp.float32)  # NCHW

    fwd = jax.jit(discriminator_forward)
    out = jax.block_until_ready(fwd(params, img))
    assert out.shape == (2, 1), out.shape

    ref = jax.block_until_ready(reference_forward(params, img))
    # bf16 matmul inputs (f32 accumulation) introduce ~0.5% quantization noise.
    np.testing.assert_allclose(np.asarray(out), np.asarray(ref), rtol=5e-2, atol=3e-2)

    print("KERNEL_OK")
</pallas_src>

<mosaic_0001>
module attributes {stable_mosaic.version = 11 : i64} {
  func.func @_fused_matmul_kernel(%arg0: i32, %arg1: memref<128x36xbf16, #tpu.memory_space<vmem>>, %arg2: memref<36x16xbf16, #tpu.memory_space<vmem>>, %arg3: memref<1x16xf32, #tpu.memory_space<vmem>>, %arg4: memref<128x16xf32, #tpu.memory_space<vmem>>) attributes {dimension_semantics = [#tpu.dimension_semantics<parallel>], iteration_bounds = array<i64: 1>, scalar_prefetch = 0 : i64, scratch_operands = 0 : i64, tpu.core_type = #tpu.core_type<tc>, window_params = [{transform_indices = @transform_0, window_bounds = array<i64: 128, 36>}, {pipeline_mode = #tpu.pipeline_mode<synchronous>, transform_indices = @transform_1, window_bounds = array<i64: 36, 16>}, {pipeline_mode = #tpu.pipeline_mode<synchronous>, transform_indices = @transform_2, window_bounds = array<i64: 1, 16>}, {transform_indices = @transform_3, window_bounds = array<i64: 128, 16>}]} {
    %c0 = arith.constant 0 : index
    %c0_0 = arith.constant 0 : index
    %0 = vector.load %arg1[%c0, %c0_0] : memref<128x36xbf16, #tpu.memory_space<vmem>>, vector<128x36xbf16>
    %c0_1 = arith.constant 0 : index
    %c0_2 = arith.constant 0 : index
    %1 = vector.load %arg2[%c0_1, %c0_2] : memref<36x16xbf16, #tpu.memory_space<vmem>>, vector<36x16xbf16>
    %cst = arith.constant dense<0.000000e+00> : vector<128x16xf32>
    %2 = tpu.matmul %0, %1, %cst {dimension_numbers = #tpu.dot_dimension_numbers<[1], [0], [0], [1], [0, 0, 1, 1], [], []>} : vector<128x36xbf16>, vector<36x16xbf16>, vector<128x16xf32> -> vector<128x16xf32>
    %c0_3 = arith.constant 0 : index
    %c0_4 = arith.constant 0 : index
    %3 = vector.load %arg3[%c0_3, %c0_4] : memref<1x16xf32, #tpu.memory_space<vmem>>, vector<1x16xf32>
    %4 = vector.broadcast %3 : vector<1x16xf32> to vector<128x16xf32>
    %5 = arith.addf %2, %4 : vector<128x16xf32>
    %cst_5 = arith.constant 0.000000e+00 : f32
    %6 = vector.broadcast %cst_5 : f32 to vector<128x16xf32>
    %7 = arith.cmpf oge, %5, %6 : vector<128x16xf32>
    %cst_6 = arith.constant 2.000000e-01 : f32
    %8 = vector.broadcast %cst_6 : f32 to vector<128x16xf32>
    %9 = arith.mulf %8, %5 : vector<128x16xf32>
    %10 = arith.select %7, %5, %9 : vector<128x16xi1>, vector<128x16xf32>
    %c0_7 = arith.constant 0 : index
    %c0_8 = arith.constant 0 : index
    %11 = vector.load %arg4[%c0_7, %c0_8] : memref<128x16xf32, #tpu.memory_space<vmem>>, vector<128x16xf32>
    tpu.vector_store %arg4[%c0_7, %c0_8], %10 {strides = array<i32>} : memref<128x16xf32, #tpu.memory_space<vmem>>, vector<128x16xf32>,
    return
  }
  func.func @transform_0(%arg0: i32) -> (i32, i32) {
    %c0_i32 = arith.constant 0 : i32
    %c0_i32_0 = arith.constant 0 : i32
    return %arg0, %c0_i32 : i32, i32
  }
  func.func @transform_1(%arg0: i32) -> (i32, i32) {
    %c0_i32 = arith.constant 0 : i32
    %c0_i32_0 = arith.constant 0 : i32
    %c0_i32_1 = arith.constant 0 : i32
    return %c0_i32, %c0_i32_0 : i32, i32
  }
  func.func @transform_2(%arg0: i32) -> (i32, i32) {
    %c0_i32 = arith.constant 0 : i32
    %c0_i32_0 = arith.constant 0 : i32
    %c0_i32_1 = arith.constant 0 : i32
    return %c0_i32, %c0_i32_0 : i32, i32
  }
  func.func @transform_3(%arg0: i32) -> (i32, i32) {
    %c0_i32 = arith.constant 0 : i32
    %c0_i32_0 = arith.constant 0 : i32
    return %arg0, %c0_i32 : i32, i32
  }
}

module attributes {stable_mosaic.version = 11 : i64} {
  func.func @_fused_matmul_kernel(%arg0: i32, %arg1: memref<32x144xbf16, #tpu.memory_space<vmem>>, %arg2: memref<144x32xbf16, #tpu.memory_space<vmem>>, %arg3: memref<1x32xf32, #tpu.memory_space<vmem>>, %arg4: memref<1x32xf32, #tpu.memory_space<vmem>>, %arg5: memref<1x32xf32, #tpu.memory_space<vmem>>, %arg6: memref<32x32xf32, #tpu.memory_space<vmem>>) attributes {dimension_semantics = [#tpu.dimension_semantics<parallel>], iteration_bounds = array<i64: 1>, scalar_prefetch = 0 : i64, scratch_operands = 0 : i64, tpu.core_type = #tpu.core_type<tc>, window_params = [{transform_indices = @transform_0, window_bounds = array<i64: 32, 144>}, {pipeline_mode = #tpu.pipeline_mode<synchronous>, transform_indices = @transform_1, window_bounds = array<i64: 144, 32>}, {pipeline_mode = #tpu.pipeline_mode<synchronous>, transform_indices = @transform_2, window_bounds = array<i64: 1, 32>}, {pipeline_mode = #tpu.pipeline_mode<synchronous>, transform_indices = @transform_3, window_bounds = array<i64: 1, 32>}, {pipeline_mode = #tpu.pipeline_mode<synchronous>, transform_indices = @transform_4, window_bounds = array<i64: 1, 32>}, {transform_indices = @transform_5, window_bounds = array<i64: 32, 32>}]} {
    %c0 = arith.constant 0 : index
    %c0_0 = arith.constant 0 : index
    %0 = vector.load %arg1[%c0, %c0_0] : memref<32x144xbf16, #tpu.memory_space<vmem>>, vector<32x144xbf16>
    %c0_1 = arith.constant 0 : index
    %c0_2 = arith.constant 0 : index
    %1 = vector.load %arg2[%c0_1, %c0_2] : memref<144x32xbf16, #tpu.memory_space<vmem>>, vector<144x32xbf16>
    %cst = arith.constant dense<0.000000e+00> : vector<32x32xf32>
    %2 = tpu.matmul %0, %1, %cst {dimension_numbers = #tpu.dot_dimension_numbers<[1], [0], [0], [1], [0, 0, 1, 1], [], []>} : vector<32x144xbf16>, vector<144x32xbf16>, vector<32x32xf32> -> vector<32x32xf32>
    %c0_3 = arith.constant 0 : index
    %c0_4 = arith.constant 0 : index
    %3 = vector.load %arg3[%c0_3, %c0_4] : memref<1x32xf32, #tpu.memory_space<vmem>>, vector<1x32xf32>
    %4 = vector.broadcast %3 : vector<1x32xf32> to vector<32x32xf32>
    %5 = arith.addf %2, %4 : vector<32x32xf32>
    %cst_5 = arith.constant 0.000000e+00 : f32
    %6 = vector.broadcast %cst_5 : f32 to vector<32x32xf32>
    %7 = arith.cmpf oge, %5, %6 : vector<32x32xf32>
    %cst_6 = arith.constant 2.000000e-01 : f32
    %8 = vector.broadcast %cst_6 : f32 to vector<32x32xf32>
    %9 = arith.mulf %8, %5 : vector<32x32xf32>
    %10 = arith.select %7, %5, %9 : vector<32x32xi1>, vector<32x32xf32>
    %c0_7 = arith.constant 0 : index
    %c0_8 = arith.constant 0 : index
    %11 = vector.load %arg4[%c0_7, %c0_8] : memref<1x32xf32, #tpu.memory_space<vmem>>, vector<1x32xf32>
    %12 = vector.broadcast %11 : vector<1x32xf32> to vector<32x32xf32>
    %13 = arith.mulf %10, %12 : vector<32x32xf32>
    %c0_9 = arith.constant 0 : index
    %c0_10 = arith.constant 0 : index
    %14 = vector.load %arg5[%c0_9, %c0_10] : memref<1x32xf32, #tpu.memory_space<vmem>>, vector<1x32xf32>
    %15 = vector.broadcast %14 : vector<1x32xf32> to vector<32x32xf32>
    %16 = arith.addf %13, %15 : vector<32x32xf32>
    %c0_11 = arith.constant 0 : index
    %c0_12 = arith.constant 0 : index
    %17 = vector.load %arg6[%c0_11, %c0_12] : memref<32x32xf32, #tpu.memory_space<vmem>>, vector<32x32xf32>
    tpu.vector_store %arg6[%c0_11, %c0_12], %16 {strides = array<i32>} : memref<32x32xf32, #tpu.memory_space<vmem>>, vector<32x32xf32>,
    return
  }
  func.func @transform_0(%arg0: i32) -> (i32, i32) {
    %c0_i32 = arith.constant 0 : i32
    %c0_i32_0 = arith.constant 0 : i32
    return %arg0, %c0_i32 : i32, i32
  }
  func.func @transform_1(%arg0: i32) -> (i32, i32) {
    %c0_i32 = arith.constant 0 : i32
    %c0_i32_0 = arith.constant 0 : i32
    %c0_i32_1 = arith.constant 0 : i32
    return %c0_i32, %c0_i32_0 : i32, i32
  }
  func.func @transform_2(%arg0: i32) -> (i32, i32) {
    %c0_i32 = arith.constant 0 : i32
    %c0_i32_0 = arith.constant 0 : i32
    %c0_i32_1 = arith.constant 0 : i32
    return %c0_i32, %c0_i32_0 : i32, i32
  }
  func.func @transform_3(%arg0: i32) -> (i32, i32) {
    %c0_i32 = arith.constant 0 : i32
    %c0_i32_0 = arith.constant 0 : i32
    %c0_i32_1 = arith.constant 0 : i32
    return %c0_i32, %c0_i32_0 : i32, i32
  }
  func.func @transform_4(%arg0: i32) -> (i32, i32) {
    %c0_i32 = arith.constant 0 : i32
    %c0_i32_0 = arith.constant 0 : i32
    %c0_i32_1 = arith.constant 0 : i32
    return %c0_i32, %c0_i32_0 : i32, i32
  }
  func.func @transform_5(%arg0: i32) -> (i32, i32) {
    %c0_i32 = arith.constant 0 : i32
    %c0_i32_0 = arith.constant 0 : i32
    return %arg0, %c0_i32 : i32, i32
  }
}

module attributes {stable_mosaic.version = 11 : i64} {
  func.func @_fused_matmul_kernel(%arg0: i32, %arg1: memref<8x288xbf16, #tpu.memory_space<vmem>>, %arg2: memref<288x64xbf16, #tpu.memory_space<vmem>>, %arg3: memref<1x64xf32, #tpu.memory_space<vmem>>, %arg4: memref<1x64xf32, #tpu.memory_space<vmem>>, %arg5: memref<1x64xf32, #tpu.memory_space<vmem>>, %arg6: memref<8x64xf32, #tpu.memory_space<vmem>>) attributes {dimension_semantics = [#tpu.dimension_semantics<parallel>], iteration_bounds = array<i64: 1>, scalar_prefetch = 0 : i64, scratch_operands = 0 : i64, tpu.core_type = #tpu.core_type<tc>, window_params = [{transform_indices = @transform_0, window_bounds = array<i64: 8, 288>}, {pipeline_mode = #tpu.pipeline_mode<synchronous>, transform_indices = @transform_1, window_bounds = array<i64: 288, 64>}, {pipeline_mode = #tpu.pipeline_mode<synchronous>, transform_indices = @transform_2, window_bounds = array<i64: 1, 64>}, {pipeline_mode = #tpu.pipeline_mode<synchronous>, transform_indices = @transform_3, window_bounds = array<i64: 1, 64>}, {pipeline_mode = #tpu.pipeline_mode<synchronous>, transform_indices = @transform_4, window_bounds = array<i64: 1, 64>}, {transform_indices = @transform_5, window_bounds = array<i64: 8, 64>}]} {
    %c0 = arith.constant 0 : index
    %c0_0 = arith.constant 0 : index
    %0 = vector.load %arg1[%c0, %c0_0] : memref<8x288xbf16, #tpu.memory_space<vmem>>, vector<8x288xbf16>
    %c0_1 = arith.constant 0 : index
    %c0_2 = arith.constant 0 : index
    %1 = vector.load %arg2[%c0_1, %c0_2] : memref<288x64xbf16, #tpu.memory_space<vmem>>, vector<288x64xbf16>
    %cst = arith.constant dense<0.000000e+00> : vector<8x64xf32>
    %2 = tpu.matmul %0, %1, %cst {dimension_numbers = #tpu.dot_dimension_numbers<[1], [0], [0], [1], [0, 0, 1, 1], [], []>} : vector<8x288xbf16>, vector<288x64xbf16>, vector<8x64xf32> -> vector<8x64xf32>
    %c0_3 = arith.constant 0 : index
    %c0_4 = arith.constant 0 : index
    %3 = vector.load %arg3[%c0_3, %c0_4] : memref<1x64xf32, #tpu.memory_space<vmem>>, vector<1x64xf32>
    %4 = vector.broadcast %3 : vector<1x64xf32> to vector<8x64xf32>
    %5 = arith.addf %2, %4 : vector<8x64xf32>
    %cst_5 = arith.constant 0.000000e+00 : f32
    %6 = vector.broadcast %cst_5 : f32 to vector<8x64xf32>
    %7 = arith.cmpf oge, %5, %6 : vector<8x64xf32>
    %cst_6 = arith.constant 2.000000e-01 : f32
    %8 = vector.broadcast %cst_6 : f32 to vector<8x64xf32>
    %9 = arith.mulf %8, %5 : vector<8x64xf32>
    %10 = arith.select %7, %5, %9 : vector<8x64xi1>, vector<8x64xf32>
    %c0_7 = arith.constant 0 : index
    %c0_8 = arith.constant 0 : index
    %11 = vector.load %arg4[%c0_7, %c0_8] : memref<1x64xf32, #tpu.memory_space<vmem>>, vector<1x64xf32>
    %12 = vector.broadcast %11 : vector<1x64xf32> to vector<8x64xf32>
    %13 = arith.mulf %10, %12 : vector<8x64xf32>
    %c0_9 = arith.constant 0 : index
    %c0_10 = arith.constant 0 : index
    %14 = vector.load %arg5[%c0_9, %c0_10] : memref<1x64xf32, #tpu.memory_space<vmem>>, vector<1x64xf32>
    %15 = vector.broadcast %14 : vector<1x64xf32> to vector<8x64xf32>
    %16 = arith.addf %13, %15 : vector<8x64xf32>
    %c0_11 = arith.constant 0 : index
    %c0_12 = arith.constant 0 : index
    %17 = vector.load %arg6[%c0_11, %c0_12] : memref<8x64xf32, #tpu.memory_space<vmem>>, vector<8x64xf32>
    tpu.vector_store %arg6[%c0_11, %c0_12], %16 {strides = array<i32>} : memref<8x64xf32, #tpu.memory_space<vmem>>, vector<8x64xf32>,
    return
  }
  func.func @transform_0(%arg0: i32) -> (i32, i32) {
    %c0_i32 = arith.constant 0 : i32
    %c0_i32_0 = arith.constant 0 : i32
    return %arg0, %c0_i32 : i32, i32
  }
  func.func @transform_1(%arg0: i32) -> (i32, i32) {
    %c0_i32 = arith.constant 0 : i32
    %c0_i32_0 = arith.constant 0 : i32
    %c0_i32_1 = arith.constant 0 : i32
    return %c0_i32, %c0_i32_0 : i32, i32
  }
  func.func @transform_2(%arg0: i32) -> (i32, i32) {
    %c0_i32 = arith.constant 0 : i32
    %c0_i32_0 = arith.constant 0 : i32
    %c0_i32_1 = arith.constant 0 : i32
    return %c0_i32, %c0_i32_0 : i32, i32
  }
  func.func @transform_3(%arg0: i32) -> (i32, i32) {
    %c0_i32 = arith.constant 0 : i32
    %c0_i32_0 = arith.constant 0 : i32
    %c0_i32_1 = arith.constant 0 : i32
    return %c0_i32, %c0_i32_0 : i32, i32
  }
  func.func @transform_4(%arg0: i32) -> (i32, i32) {
    %c0_i32 = arith.constant 0 : i32
    %c0_i32_0 = arith.constant 0 : i32
    %c0_i32_1 = arith.constant 0 : i32
    return %c0_i32, %c0_i32_0 : i32, i32
  }
  func.func @transform_5(%arg0: i32) -> (i32, i32) {
    %c0_i32 = arith.constant 0 : i32
    %c0_i32_0 = arith.constant 0 : i32
    return %arg0, %c0_i32 : i32, i32
  }
}

module attributes {stable_mosaic.version = 11 : i64} {
  func.func @_fused_matmul_kernel(%arg0: i32, %arg1: memref<2x576xbf16, #tpu.memory_space<vmem>>, %arg2: memref<576x128xbf16, #tpu.memory_space<vmem>>, %arg3: memref<1x128xf32, #tpu.memory_space<vmem>>, %arg4: memref<1x128xf32, #tpu.memory_space<vmem>>, %arg5: memref<1x128xf32, #tpu.memory_space<vmem>>, %arg6: memref<2x128xf32, #tpu.memory_space<vmem>>) attributes {dimension_semantics = [#tpu.dimension_semantics<parallel>], iteration_bounds = array<i64: 1>, scalar_prefetch = 0 : i64, scratch_operands = 0 : i64, tpu.core_type = #tpu.core_type<tc>, window_params = [{transform_indices = @transform_0, window_bounds = array<i64: 2, 576>}, {pipeline_mode = #tpu.pipeline_mode<synchronous>, transform_indices = @transform_1, window_bounds = array<i64: 576, 128>}, {pipeline_mode = #tpu.pipeline_mode<synchronous>, transform_indices = @transform_2, window_bounds = array<i64: 1, 128>}, {pipeline_mode = #tpu.pipeline_mode<synchronous>, transform_indices = @transform_3, window_bounds = array<i64: 1, 128>}, {pipeline_mode = #tpu.pipeline_mode<synchronous>, transform_indices = @transform_4, window_bounds = array<i64: 1, 128>}, {transform_indices = @transform_5, window_bounds = array<i64: 2, 128>}]} {
    %c0 = arith.constant 0 : index
    %c0_0 = arith.constant 0 : index
    %0 = vector.load %arg1[%c0, %c0_0] : memref<2x576xbf16, #tpu.memory_space<vmem>>, vector<2x576xbf16>
    %c0_1 = arith.constant 0 : index
    %c0_2 = arith.constant 0 : index
    %1 = vector.load %arg2[%c0_1, %c0_2] : memref<576x128xbf16, #tpu.memory_space<vmem>>, vector<576x128xbf16>
    %cst = arith.constant dense<0.000000e+00> : vector<2x128xf32>
    %2 = tpu.matmul %0, %1, %cst {dimension_numbers = #tpu.dot_dimension_numbers<[1], [0], [0], [1], [0, 0, 1, 1], [], []>} : vector<2x576xbf16>, vector<576x128xbf16>, vector<2x128xf32> -> vector<2x128xf32>
    %c0_3 = arith.constant 0 : index
    %c0_4 = arith.constant 0 : index
    %3 = vector.load %arg3[%c0_3, %c0_4] : memref<1x128xf32, #tpu.memory_space<vmem>>, vector<1x128xf32>
    %4 = vector.broadcast %3 : vector<1x128xf32> to vector<2x128xf32>
    %5 = arith.addf %2, %4 : vector<2x128xf32>
    %cst_5 = arith.constant 0.000000e+00 : f32
    %6 = vector.broadcast %cst_5 : f32 to vector<2x128xf32>
    %7 = arith.cmpf oge, %5, %6 : vector<2x128xf32>
    %cst_6 = arith.constant 2.000000e-01 : f32
    %8 = vector.broadcast %cst_6 : f32 to vector<2x128xf32>
    %9 = arith.mulf %8, %5 : vector<2x128xf32>
    %10 = arith.select %7, %5, %9 : vector<2x128xi1>, vector<2x128xf32>
    %c0_7 = arith.constant 0 : index
    %c0_8 = arith.constant 0 : index
    %11 = vector.load %arg4[%c0_7, %c0_8] : memref<1x128xf32, #tpu.memory_space<vmem>>, vector<1x128xf32>
    %12 = vector.broadcast %11 : vector<1x128xf32> to vector<2x128xf32>
    %13 = arith.mulf %10, %12 : vector<2x128xf32>
    %c0_9 = arith.constant 0 : index
    %c0_10 = arith.constant 0 : index
    %14 = vector.load %arg5[%c0_9, %c0_10] : memref<1x128xf32, #tpu.memory_space<vmem>>, vector<1x128xf32>
    %15 = vector.broadcast %14 : vector<1x128xf32> to vector<2x128xf32>
    %16 = arith.addf %13, %15 : vector<2x128xf32>
    %c0_11 = arith.constant 0 : index
    %c0_12 = arith.constant 0 : index
    %17 = vector.load %arg6[%c0_11, %c0_12] : memref<2x128xf32, #tpu.memory_space<vmem>>, vector<2x128xf32>
    tpu.vector_store %arg6[%c0_11, %c0_12], %16 {strides = array<i32>} : memref<2x128xf32, #tpu.memory_space<vmem>>, vector<2x128xf32>,
    return
  }
  func.func @transform_0(%arg0: i32) -> (i32, i32) {
    %c0_i32 = arith.constant 0 : i32
    %c0_i32_0 = arith.constant 0 : i32
    return %arg0, %c0_i32 : i32, i32
  }
  func.func @transform_1(%arg0: i32) -> (i32, i32) {
    %c0_i32 = arith.constant 0 : i32
    %c0_i32_0 = arith.constant 0 : i32
    %c0_i32_1 = arith.constant 0 : i32
    return %c0_i32, %c0_i32_0 : i32, i32
  }
  func.func @transform_2(%arg0: i32) -> (i32, i32) {
    %c0_i32 = arith.constant 0 : i32
    %c0_i32_0 = arith.constant 0 : i32
    %c0_i32_1 = arith.constant 0 : i32
    return %c0_i32, %c0_i32_0 : i32, i32
  }
  func.func @transform_3(%arg0: i32) -> (i32, i32) {
    %c0_i32 = arith.constant 0 : i32
    %c0_i32_0 = arith.constant 0 : i32
    %c0_i32_1 = arith.constant 0 : i32
    return %c0_i32, %c0_i32_0 : i32, i32
  }
  func.func @transform_4(%arg0: i32) -> (i32, i32) {
    %c0_i32 = arith.constant 0 : i32
    %c0_i32_0 = arith.constant 0 : i32
    %c0_i32_1 = arith.constant 0 : i32
    return %c0_i32, %c0_i32_0 : i32, i32
  }
  func.func @transform_5(%arg0: i32) -> (i32, i32) {
    %c0_i32 = arith.constant 0 : i32
    %c0_i32_0 = arith.constant 0 : i32
    return %arg0, %c0_i32 : i32, i32
  }
}

module attributes {stable_mosaic.version = 11 : i64} {
  func.func @_fused_matmul_kernel(%arg0: i32, %arg1: memref<2x128xf32, #tpu.memory_space<vmem>>, %arg2: memref<128x1xf32, #tpu.memory_space<vmem>>, %arg3: memref<1x1xf32, #tpu.memory_space<vmem>>, %arg4: memref<2x1xf32, #tpu.memory_space<vmem>>) attributes {dimension_semantics = [#tpu.dimension_semantics<parallel>], iteration_bounds = array<i64: 1>, scalar_prefetch = 0 : i64, scratch_operands = 0 : i64, tpu.core_type = #tpu.core_type<tc>, window_params = [{transform_indices = @transform_0, window_bounds = array<i64: 2, 128>}, {pipeline_mode = #tpu.pipeline_mode<synchronous>, transform_indices = @transform_1, window_bounds = array<i64: 128, 1>}, {pipeline_mode = #tpu.pipeline_mode<synchronous>, transform_indices = @transform_2, window_bounds = array<i64: 1, 1>}, {transform_indices = @transform_3, window_bounds = array<i64: 2, 1>}]} {
    %c0 = arith.constant 0 : index
    %c0_0 = arith.constant 0 : index
    %0 = vector.load %arg1[%c0, %c0_0] : memref<2x128xf32, #tpu.memory_space<vmem>>, vector<2x128xf32>
    %c0_1 = arith.constant 0 : index
    %c0_2 = arith.constant 0 : index
    %1 = vector.load %arg2[%c0_1, %c0_2] : memref<128x1xf32, #tpu.memory_space<vmem>>, vector<128x1xf32>
    %cst = arith.constant dense<0.000000e+00> : vector<2x1xf32>
    %2 = tpu.matmul %0, %1, %cst {dimension_numbers = #tpu.dot_dimension_numbers<[1], [0], [0], [1], [0, 0, 1, 1], [], []>} : vector<2x128xf32>, vector<128x1xf32>, vector<2x1xf32> -> vector<2x1xf32>
    %c0_3 = arith.constant 0 : index
    %c0_4 = arith.constant 0 : index
    %3 = vector.load %arg3[%c0_3, %c0_4] : memref<1x1xf32, #tpu.memory_space<vmem>>, vector<1x1xf32>
    %4 = vector.broadcast %3 : vector<1x1xf32> to vector<2x1xf32>
    %5 = arith.addf %2, %4 : vector<2x1xf32>
    %c0_5 = arith.constant 0 : index
    %c0_6 = arith.constant 0 : index
    %6 = vector.load %arg4[%c0_5, %c0_6] : memref<2x1xf32, #tpu.memory_space<vmem>>, vector<2x1xf32>
    tpu.vector_store %arg4[%c0_5, %c0_6], %5 {strides = array<i32>} : memref<2x1xf32, #tpu.memory_space<vmem>>, vector<2x1xf32>,
    return
  }
  func.func @transform_0(%arg0: i32) -> (i32, i32) {
    %c0_i32 = arith.constant 0 : i32
    %c0_i32_0 = arith.constant 0 : i32
    return %arg0, %c0_i32 : i32, i32
  }
  func.func @transform_1(%arg0: i32) -> (i32, i32) {
    %c0_i32 = arith.constant 0 : i32
    %c0_i32_0 = arith.constant 0 : i32
    %c0_i32_1 = arith.constant 0 : i32
    return %c0_i32, %c0_i32_0 : i32, i32
  }
  func.func @transform_2(%arg0: i32) -> (i32, i32) {
    %c0_i32 = arith.constant 0 : i32
    %c0_i32_0 = arith.constant 0 : i32
    %c0_i32_1 = arith.constant 0 : i32
    return %c0_i32, %c0_i32_0 : i32, i32
  }
  func.func @transform_3(%arg0: i32) -> (i32, i32) {
    %c0_i32 = arith.constant 0 : i32
    %c0_i32_0 = arith.constant 0 : i32
    return %arg0, %c0_i32 : i32, i32
  }
}

</mosaic_0001>

<llo_original>
// kernel: discriminator_forward.5
$region0: #{discriminator_forward.5}
  #allocation0 [shape = 'u32[]', space=smem, size = 0x4, offset = 0x4, fixed_abs, tag = 'smem constant byte address 0x4 - core index']
  #allocation1 [shape = 'u32[144,128]{1,0:T(1,128)}', space=vmem, size = 0x12000, scoped, tag = 'internal scratch']
  %s0 = inlined_call_operand.vmem [shape: bf16[128,36], index: 0, kind: input, shape index: {}]
  %s1 = inlined_call_operand.vmem [shape: bf16[36,16], index: 1, kind: input, shape index: {}]
  %s2 = inlined_call_operand.vmem [shape: f32[1,16], index: 2, kind: input, shape index: {}]
  %s3 = inlined_call_operand.vmem [shape: f32[128,16], index: 3, kind: output, shape index: {}]
  %s4 = sld [smem:[#allocation0]]
  $region22: #{discriminator_forward.5} parent=0
    _
  %s6 = ssub.s32 1, %s4
  %s7 = scalar_select 0, %s6, %s4
  // Predicated region
  $region2: #{discriminator_forward.5} parent=0 // pred_check
    _
  $region3: #{discriminator_forward.5} parent=0 // pred_check_branch
    %9 = sbr.rel (0) target = $region5
  $region4: #{discriminator_forward.5} parent=0 // pred_region
    _
  $region5: #{discriminator_forward.5} parent=0 // pred_fallthru
    _
  // Predicated region
  $region6: #{discriminator_forward.5} parent=0 // pred_check
    _
  $region7: #{discriminator_forward.5} parent=0 // pred_check_branch
    %11 = sbr.rel (0) target = $region9
  $region8: #{discriminator_forward.5} parent=0 // pred_region
    _
  $region9: #{discriminator_forward.5} parent=0 // pred_fallthru
    _
  // Predicated region
  $region10: #{discriminator_forward.5} parent=0 // pred_check
    _
  $region11: #{discriminator_forward.5} parent=0 // pred_check_branch
    %13 = sbr.rel (0) target = $region13
  $region12: #{discriminator_forward.5} parent=0 // pred_region
    _
  $region13: #{discriminator_forward.5} parent=0 // pred_fallthru
    _
  %v15 = vld [vmem:[%s0] sm:$0xf]
  %v16 = vld [vmem:[%s0 + $0x4] sm:$0xf]
  %v17 = vld [vmem:[%s0 + $0x8] sm:$0xf]
  %v18 = vld [vmem:[%s0 + $0xc] sm:$0xf]
  %v19 = vld [vmem:[%s0 + $0x10] sm:$0xf]
  %v20 = vld [vmem:[%s0 + $0x14] sm:$0xf]
  %v21 = vld [vmem:[%s0 + $0x18] sm:$0xf]
  %v22 = vld [vmem:[%s0 + $0x1c] sm:$0xf]
  %v23 = vld [vmem:[%s0 + $0x20] sm:$0xf]
  %v24 = vld [vmem:[%s0 + $0x24] sm:$0xf]
  %v25 = vld [vmem:[%s0 + $0x28] sm:$0xf]
  %v26 = vld [vmem:[%s0 + $0x2c] sm:$0xf]
  %v27 = vld [vmem:[%s0 + $0x30] sm:$0xf]
  %v28 = vld [vmem:[%s0 + $0x34] sm:$0xf]
  %v29 = vld [vmem:[%s0 + $0x38] sm:$0xf]
  %v30 = vld [vmem:[%s0 + $0x3c] sm:$0xf]
  %v31 = vld [vmem:[%s1] sm:$0xf]
  %v32 = vld [vmem:[%s1 + $0x4] sm:$0xf]
  %v33 = vld [vmem:[%s1 + $0x8] sm:$0xf]
  %v34 = vld [vmem:[%s1 + $0xc] sm:$0xf]
  %v35 = vld [vmem:[%s1 + $0x10] sm:$0x3]
  %v36 = vld [vmem:[%s2] sm:$0x1]
  %v38 = vlaneseq
  %v39 = vshrl.u32 %v38, 7
  %v40 = vsub.s32 0, %v39
  %v41 = vrot.slane %v36, %v40
  %v59 = vunpack.c.l.b16 %v15
  %v60 = vunpack.c.l.b16 %v16
  %v61 = vunpack.c.l.b16 %v17
  %v62 = vunpack.c.l.b16 %v18
  %v63 = vunpack.c.l.b16 %v19
  %v64 = vunpack.c.l.b16 %v20
  %v65 = vunpack.c.l.b16 %v21
  %v66 = vunpack.c.l.b16 %v22
  %v67 = vunpack.c.l.b16 %v23
  %v68 = vunpack.c.l.b16 %v24
  %v69 = vunpack.c.l.b16 %v25
  %v70 = vunpack.c.l.b16 %v26
  %v71 = vunpack.c.l.b16 %v27
  %v72 = vunpack.c.l.b16 %v28
  %v73 = vunpack.c.l.b16 %v29
  %v74 = vunpack.c.l.b16 %v30
  %v75 = vpack.c.b16 %v60, %v59
  %v76 = vpack.c.b16 %v62, %v61
  %v77 = vpack.c.b16 %v64, %v63
  %v78 = vpack.c.b16 %v66, %v65
  %v79 = vpack.c.b16 %v68, %v67
  %v80 = vpack.c.b16 %v70, %v69
  %v81 = vpack.c.b16 %v72, %v71
  %v82 = vpack.c.b16 %v74, %v73
  %v88 = vunpack.c.l.b16 %v31
  %v89 = vunpack.c.l.b16 %v32
  %v90 = vunpack.c.l.b16 %v33
  %v91 = vunpack.c.l.b16 %v34
  %v92 = vunpack.c.l.b16 %v35
  %v93 = vpack.c.b16 %v89, %v88
  %v94 = vpack.c.b16 %v91, %v90
  %v95 = vpack.c.b16 %v92, %v92
  %vm98 = vcmask 293888
  %v100 = vsel %vm98, %v75, 0
  %v103 = vsel %vm98, %v76, 0
  %v106 = vsel %vm98, %v77, 0
  %v109 = vsel %vm98, %v78, 0
  %v112 = vsel %vm98, %v79, 0
  %v115 = vsel %vm98, %v80, 0
  %v118 = vsel %vm98, %v81, 0
  %v121 = vsel %vm98, %v82, 0
  %vm123 = vcmask 1041408
  %v125 = vsel %vm123, %v95, 0
  %127 = vmatprep.subr.bf16.mxu0 0
  %128 = vmatpush1.bf16.msra.mxu0 %v93
  %129 = vmatprep.subr.bf16.mxu0 0
  %130 = vmatpush1.bf16.msra.mxu0 %v94
  %131 = vmatprep.subr.bf16.mxu0 0
  %132 = vmatpush1.bf16.msra.mxu0 %v125
  %133 = vmatprep.subr.bf16.mxu0 0
  %134 = vmatpush1.bf16.msra.mxu0 0
  %135 = vmatprep.subr.bf16.mxu0 0
  %136 = vmatpush1.bf16.msra.mxu0 0
  %137 = vmatprep.subr.bf16.mxu0 0
  %138 = vmatpush1.bf16.msra.mxu0 0
  %139 = vmatprep.subr.bf16.mxu0 0
  %140 = vmatpush1.bf16.msra.mxu0 0
  %141 = vmatprep.subr.bf16.mxu0 0
  %142 = vmatpush1.bf16.msra.mxu0 0
  %143 = vmatprep.subr.bf16.mxu0 0
  %144 = vmatpush1.bf16.msra.mxu0 0
  %145 = vmatprep.subr.bf16.mxu0 0
  %146 = vmatpush1.bf16.msra.mxu0 0
  %147 = vmatprep.subr.bf16.mxu0 0
  %148 = vmatpush1.bf16.msra.mxu0 0
  %149 = vmatprep.subr.bf16.mxu0 0
  %150 = vmatpush1.bf16.msra.mxu0 0
  %151 = vmatprep.subr.bf16.mxu0 0
  %152 = vmatpush1.bf16.msra.mxu0 0
  %153 = vmatprep.subr.bf16.mxu0 0
  %154 = vmatpush1.bf16.msra.mxu0 0
  %155 = vmatprep.subr.bf16.mxu0 0
  %156 = vmatpush1.bf16.msra.mxu0 0
  %157 = vmatprep.subr.bf16.mxu0 0
  %158 = vmatpush1.bf16.msra.mxu0 0
  %159 = vmatprep.mubr.bf16.mxu0 0
  %160 = vmatmul.mubr.bf16.gmra.mrb[0].mxu0 %v100
  %v161 = vpop.f32.mrb[0].mxu0
  %v162 = vadd.f32 %v41, %v161
  %v163 = vpop.f32.mrb[0].mxu0
  %v164 = vpop.f32.mrb[0].mxu0
  %v165 = vadd.f32 %v41, %v164
  %v166 = vpop.f32.mrb[0].mxu0
  %167 = vmatprep.mubr.bf16.mxu0 0
  %168 = vmatmul.mubr.bf16.gmra.mrb[0].mxu0 %v103
  %v169 = vpop.f32.mrb[0].mxu0
  %v170 = vadd.f32 %v41, %v169
  %v171 = vpop.f32.mrb[0].mxu0
  %v172 = vpop.f32.mrb[0].mxu0
  %v173 = vadd.f32 %v41, %v172
  %v174 = vpop.f32.mrb[0].mxu0
  %175 = vmatprep.mubr.bf16.mxu0 0
  %176 = vmatmul.mubr.bf16.gmra.mrb[0].mxu0 %v106
  %v177 = vpop.f32.mrb[0].mxu0
  %v178 = vadd.f32 %v41, %v177
  %v179 = vpop.f32.mrb[0].mxu0
  %v180 = vpop.f32.mrb[0].mxu0
  %v181 = vadd.f32 %v41, %v180
  %v182 = vpop.f32.mrb[0].mxu0
  %183 = vmatprep.mubr.bf16.mxu0 0
  %184 = vmatmul.mubr.bf16.gmra.mrb[0].mxu0 %v109
  %v185 = vpop.f32.mrb[0].mxu0
  %v186 = vadd.f32 %v41, %v185
  %v187 = vpop.f32.mrb[0].mxu0
  %v188 = vpop.f32.mrb[0].mxu0
  %v189 = vadd.f32 %v41, %v188
  %v190 = vpop.f32.mrb[0].mxu0
  %191 = vmatprep.mubr.bf16.mxu0 0
  %192 = vmatmul.mubr.bf16.gmra.mrb[0].mxu0 %v112
  %v193 = vpop.f32.mrb[0].mxu0
  %v194 = vadd.f32 %v41, %v193
  %v195 = vpop.f32.mrb[0].mxu0
  %v196 = vpop.f32.mrb[0].mxu0
  %v197 = vadd.f32 %v41, %v196
  %v198 = vpop.f32.mrb[0].mxu0
  %199 = vmatprep.mubr.bf16.mxu0 0
  %200 = vmatmul.mubr.bf16.gmra.mrb[0].mxu0 %v115
  %v201 = vpop.f32.mrb[0].mxu0
  %v202 = vadd.f32 %v41, %v201
  %v203 = vpop.f32.mrb[0].mxu0
  %v204 = vpop.f32.mrb[0].mxu0
  %v205 = vadd.f32 %v41, %v204
  %v206 = vpop.f32.mrb[0].mxu0
  %207 = vmatprep.mubr.bf16.mxu0 0
  %208 = vmatmul.mubr.bf16.gmra.mrb[0].mxu0 %v118
  %v209 = vpop.f32.mrb[0].mxu0
  %v210 = vadd.f32 %v41, %v209
  %v211 = vpop.f32.mrb[0].mxu0
  %v212 = vpop.f32.mrb[0].mxu0
  %v213 = vadd.f32 %v41, %v212
  %v214 = vpop.f32.mrb[0].mxu0
  %215 = vmatprep.mubr.bf16.mxu0 0
  %216 = vmatmul.mubr.bf16.gmra.mrb[0].mxu0 %v121
  %v217 = vpop.f32.mrb[0].mxu0
  %v218 = vadd.f32 %v41, %v217
  %v219 = vpop.f32.mrb[0].mxu0
  %v220 = vpop.f32.mrb[0].mxu0
  %v221 = vadd.f32 %v41, %v220
  %v222 = vpop.f32.mrb[0].mxu0
  %223 = vdwg.mxu0
  %vm224 = vcmp.ge.f32.partialorder %v162, 0.0
  %vm225 = vcmp.ge.f32.partialorder %v165, 0.0
  %vm226 = vcmp.ge.f32.partialorder %v170, 0.0
  %vm227 = vcmp.ge.f32.partialorder %v173, 0.0
  %vm228 = vcmp.ge.f32.partialorder %v178, 0.0
  %vm229 = vcmp.ge.f32.partialorder %v181, 0.0
  %vm230 = vcmp.ge.f32.partialorder %v186, 0.0
  %vm231 = vcmp.ge.f32.partialorder %v189, 0.0
  %vm232 = vcmp.ge.f32.partialorder %v194, 0.0
  %vm233 = vcmp.ge.f32.partialorder %v197, 0.0
  %vm234 = vcmp.ge.f32.partialorder %v202, 0.0
  %vm235 = vcmp.ge.f32.partialorder %v205, 0.0
  %vm236 = vcmp.ge.f32.partialorder %v210, 0.0
  %vm237 = vcmp.ge.f32.partialorder %v213, 0.0
  %vm238 = vcmp.ge.f32.partialorder %v218, 0.0
  %vm239 = vcmp.ge.f32.partialorder %v221, 0.0
  %v240 = vmul.f32 %v162, 0.2
  %v241 = vmul.f32 %v165, 0.2
  %v242 = vmul.f32 %v170, 0.2
  %v243 = vmul.f32 %v173, 0.2
  %v244 = vmul.f32 %v178, 0.2
  %v245 = vmul.f32 %v181, 0.2
  %v246 = vmul.f32 %v186, 0.2
  %v247 = vmul.f32 %v189, 0.2
  %v248 = vmul.f32 %v194, 0.2
  %v249 = vmul.f32 %v197, 0.2
  %v250 = vmul.f32 %v202, 0.2
  %v251 = vmul.f32 %v205, 0.2
  %v252 = vmul.f32 %v210, 0.2
  %v253 = vmul.f32 %v213, 0.2
  %v254 = vmul.f32 %v218, 0.2
  %v255 = vmul.f32 %v221, 0.2
  %v256 = vsel %vm224, %v162, %v240
  %v257 = vsel %vm225, %v165, %v241
  %v258 = vsel %vm226, %v170, %v242
  %v259 = vsel %vm227, %v173, %v243
  %v260 = vsel %vm228, %v178, %v244
  %v261 = vsel %vm229, %v181, %v245
  %v262 = vsel %vm230, %v186, %v246
  %v263 = vsel %vm231, %v189, %v247
  %v264 = vsel %vm232, %v194, %v248
  %v265 = vsel %vm233, %v197, %v249
  %v266 = vsel %vm234, %v202, %v250
  %v267 = vsel %vm235, %v205, %v251
  %v268 = vsel %vm236, %v210, %v252
  %v269 = vsel %vm237, %v213, %v253
  %v270 = vsel %vm238, %v218, %v254
  %v271 = vsel %vm239, %v221, %v255
  %vm272 = vcmask 130048
  %273 = vst.msk [vmem:[%s3] sm:$0xff] %vm272, %v256
  %274 = vst.msk [vmem:[%s3 + $0x8] sm:$0xff] %vm272, %v257
  %275 = vst.msk [vmem:[%s3 + $0x10] sm:$0xff] %vm272, %v258
  %276 = vst.msk [vmem:[%s3 + $0x18] sm:$0xff] %vm272, %v259
  %277 = vst.msk [vmem:[%s3 + $0x20] sm:$0xff] %vm272, %v260
  %278 = vst.msk [vmem:[%s3 + $0x28] sm:$0xff] %vm272, %v261
  %279 = vst.msk [vmem:[%s3 + $0x30] sm:$0xff] %vm272, %v262
  %280 = vst.msk [vmem:[%s3 + $0x38] sm:$0xff] %vm272, %v263
  %281 = vst.msk [vmem:[%s3 + $0x40] sm:$0xff] %vm272, %v264
  %282 = vst.msk [vmem:[%s3 + $0x48] sm:$0xff] %vm272, %v265
  %283 = vst.msk [vmem:[%s3 + $0x50] sm:$0xff] %vm272, %v266
  %284 = vst.msk [vmem:[%s3 + $0x58] sm:$0xff] %vm272, %v267
  %285 = vst.msk [vmem:[%s3 + $0x60] sm:$0xff] %vm272, %v268
  %286 = vst.msk [vmem:[%s3 + $0x68] sm:$0xff] %vm272, %v269
  %287 = vst.msk [vmem:[%s3 + $0x70] sm:$0xff] %vm272, %v270
  %288 = vst.msk [vmem:[%s3 + $0x78] sm:$0xff] %vm272, %v271
  // Predicated region
  $region14: #{discriminator_forward.5} parent=0 // pred_check
    _
  $region15: #{discriminator_forward.5} parent=0 // pred_check_branch
    %290 = sbr.rel (0) target = $region17
  $region16: #{discriminator_forward.5} parent=0 // pred_region
    _
  $region17: #{discriminator_forward.5} parent=0 // pred_fallthru
    _
  // Predicated region
  $region18: #{discriminator_forward.5} parent=0 // pred_check
    _
  $region19: #{discriminator_forward.5} parent=0 // pred_check_branch
    %292 = sbr.rel (0) target = $region21
  $region20: #{discriminator_forward.5} parent=0 // pred_region
    _
  $region21: #{discriminator_forward.5} parent=0 // pred_fallthru
    _

// kernel: discriminator_forward.6
$region0: #{discriminator_forward.6}
  #allocation0 [shape = 'u32[]', space=smem, size = 0x4, offset = 0x4, fixed_abs, tag = 'smem constant byte address 0x4 - core index']
  #allocation1 [shape = 'u32[144,128]{1,0:T(1,128)}', space=vmem, size = 0x12000, scoped, tag = 'internal scratch']
  %s0 = inlined_call_operand.vmem [shape: bf16[32,144], index: 0, kind: input, shape index: {}]
  %s1 = inlined_call_operand.vmem [shape: bf16[144,32], index: 1, kind: input, shape index: {}]
  %s2 = inlined_call_operand.vmem [shape: f32[1,32], index: 2, kind: input, shape index: {}]
  %s3 = inlined_call_operand.vmem [shape: f32[1,32], index: 3, kind: input, shape index: {}]
  %s4 = inlined_call_operand.vmem [shape: f32[1,32], index: 4, kind: input, shape index: {}]
  %s5 = inlined_call_operand.vmem [shape: f32[32,32], index: 5, kind: output, shape index: {}]
  %s6 = sld [smem:[#allocation0]]
  $region30: #{discriminator_forward.6} parent=0
    _
  %s8 = ssub.s32 1, %s6
  %s9 = scalar_select 0, %s8, %s6
  // Predicated region
  $region2: #{discriminator_forward.6} parent=0 // pred_check
    _
  $region3: #{discriminator_forward.6} parent=0 // pred_check_branch
    %11 = sbr.rel (0) target = $region5
  $region4: #{discriminator_forward.6} parent=0 // pred_region
    _
  $region5: #{discriminator_forward.6} parent=0 // pred_fallthru
    _
  // Predicated region
  $region6: #{discriminator_forward.6} parent=0 // pred_check
    _
  $region7: #{discriminator_forward.6} parent=0 // pred_check_branch
    %13 = sbr.rel (0) target = $region9
  $region8: #{discriminator_forward.6} parent=0 // pred_region
    _
  $region9: #{discriminator_forward.6} parent=0 // pred_fallthru
    _
  // Predicated region
  $region10: #{discriminator_forward.6} parent=0 // pred_check
    _
  $region11: #{discriminator_forward.6} parent=0 // pred_check_branch
    %15 = sbr.rel (0) target = $region13
  $region12: #{discriminator_forward.6} parent=0 // pred_region
    _
  $region13: #{discriminator_forward.6} parent=0 // pred_fallthru
    _
  // Predicated region
  $region14: #{discriminator_forward.6} parent=0 // pred_check
    _
  $region15: #{discriminator_forward.6} parent=0 // pred_check_branch
    %17 = sbr.rel (0) target = $region17
  $region16: #{discriminator_forward.6} parent=0 // pred_region
    _
  $region17: #{discriminator_forward.6} parent=0 // pred_fallthru
    _
  // Predicated region
  $region18: #{discriminator_forward.6} parent=0 // pred_check
    _
  $region19: #{discriminator_forward.6} parent=0 // pred_check_branch
    %19 = sbr.rel (0) target = $region21
  $region20: #{discriminator_forward.6} parent=0 // pred_region
    _
  $region21: #{discriminator_forward.6} parent=0 // pred_fallthru
    _
  %v21 = vld [vmem:[%s0] sm:$0xff]
  %v22 = vld [vmem:[%s0 + $0x8] sm:$0xff]
  %v23 = vld [vmem:[%s0 + $0x10] sm:$0xff]
  %v24 = vld [vmem:[%s0 + $0x18] sm:$0xff]
  %v25 = vld [vmem:[%s1] sm:$0xf]
  %v26 = vld [vmem:[%s1 + $0x4] sm:$0xf]
  %v27 = vld [vmem:[%s1 + $0x8] sm:$0xf]
  %v28 = vld [vmem:[%s1 + $0xc] sm:$0xf]
  %v29 = vld [vmem:[%s1 + $0x10] sm:$0xf]
  %v30 = vld [vmem:[%s1 + $0x14] sm:$0xf]
  %v31 = vld [vmem:[%s1 + $0x18] sm:$0xf]
  %v32 = vld [vmem:[%s1 + $0x1c] sm:$0xf]
  %v33 = vld [vmem:[%s1 + $0x20] sm:$0xf]
  %v34 = vld [vmem:[%s1 + $0x24] sm:$0xf]
  %v35 = vld [vmem:[%s1 + $0x28] sm:$0xf]
  %v36 = vld [vmem:[%s1 + $0x2c] sm:$0xf]
  %v37 = vld [vmem:[%s1 + $0x30] sm:$0xf]
  %v38 = vld [vmem:[%s1 + $0x34] sm:$0xf]
  %v39 = vld [vmem:[%s1 + $0x38] sm:$0xf]
  %v40 = vld [vmem:[%s1 + $0x3c] sm:$0xf]
  %v41 = vld [vmem:[%s1 + $0x40] sm:$0xf]
  %v42 = vld [vmem:[%s1 + $0x44] sm:$0xf]
  %v43 = vld [vmem:[%s2] sm:$0x1]
  %v45 = vlaneseq
  %v46 = vshrl.u32 %v45, 7
  %v47 = vsub.s32 0, %v46
  %v48 = vrot.slane %v43, %v47
  %v54 = vunpack.c.l.b16 %v21
  %v55 = vunpack.c.h.b16 %v21
  %v56 = vunpack.c.l.b16 %v22
  %v57 = vunpack.c.h.b16 %v22
  %v58 = vunpack.c.l.b16 %v23
  %v59 = vunpack.c.h.b16 %v23
  %v60 = vunpack.c.l.b16 %v24
  %v61 = vunpack.c.h.b16 %v24
  %v62 = vpack.c.b16 %v56, %v54
  %v63 = vpack.c.b16 %v57, %v55
  %v64 = vpack.c.b16 %v60, %v58
  %v65 = vpack.c.b16 %v61, %v59
  %v86 = vunpack.c.l.b16 %v25
  %v87 = vunpack.c.l.b16 %v26
  %v88 = vunpack.c.l.b16 %v27
  %v89 = vunpack.c.l.b16 %v28
  %v90 = vunpack.c.l.b16 %v29
  %v91 = vunpack.c.l.b16 %v30
  %v92 = vunpack.c.l.b16 %v31
  %v93 = vunpack.c.l.b16 %v32
  %v94 = vunpack.c.l.b16 %v33
  %v95 = vunpack.c.l.b16 %v34
  %v96 = vunpack.c.l.b16 %v35
  %v97 = vunpack.c.l.b16 %v36
  %v98 = vunpack.c.l.b16 %v37
  %v99 = vunpack.c.l.b16 %v38
  %v100 = vunpack.c.l.b16 %v39
  %v101 = vunpack.c.l.b16 %v40
  %v102 = vunpack.c.l.b16 %v41
  %v103 = vunpack.c.l.b16 %v42
  %v104 = vpack.c.b16 %v87, %v86
  %v105 = vpack.c.b16 %v89, %v88
  %v106 = vpack.c.b16 %v91, %v90
  %v107 = vpack.c.b16 %v93, %v92
  %v108 = vpack.c.b16 %v95, %v94
  %v109 = vpack.c.b16 %v97, %v96
  %v110 = vpack.c.b16 %v99, %v98
  %v111 = vpack.c.b16 %v101, %v100
  %v112 = vpack.c.b16 %v103, %v102
  %vm122 = vcmask 130048
  %v124 = vsel %vm122, %v63, 0
  %v127 = vsel %vm122, %v65, 0
  %129 = vmatprep.subr.bf16.mxu0 0
  %130 = vmatpush1.bf16.msra.mxu0 %v104
  %131 = vmatprep.subr.bf16.mxu0 0
  %132 = vmatpush1.bf16.msra.mxu0 %v105
  %133 = vmatprep.subr.bf16.mxu0 0
  %134 = vmatpush1.bf16.msra.mxu0 %v106
  %135 = vmatprep.subr.bf16.mxu0 0
  %136 = vmatpush1.bf16.msra.mxu0 %v107
  %137 = vmatprep.subr.bf16.mxu0 0
  %138 = vmatpush1.bf16.msra.mxu0 %v108
  %139 = vmatprep.subr.bf16.mxu0 0
  %140 = vmatpush1.bf16.msra.mxu0 %v109
  %141 = vmatprep.subr.bf16.mxu0 0
  %142 = vmatpush1.bf16.msra.mxu0 %v110
  %143 = vmatprep.subr.bf16.mxu0 0
  %144 = vmatpush1.bf16.msra.mxu0 %v111
  %145 = vmatprep.subr.bf16.mxu0 0
  %146 = vmatpush1.bf16.msra.mxu0 %v112
  %147 = vmatprep.subr.bf16.mxu0 0
  %148 = vmatpush1.bf16.msra.mxu0 0
  %149 = vmatprep.subr.bf16.mxu0 0
  %150 = vmatpush1.bf16.msra.mxu0 0
  %151 = vmatprep.subr.bf16.mxu0 0
  %152 = vmatpush1.bf16.msra.mxu0 0
  %153 = vmatprep.subr.bf16.mxu0 0
  %154 = vmatpush1.bf16.msra.mxu0 0
  %155 = vmatprep.subr.bf16.mxu0 0
  %156 = vmatpush1.bf16.msra.mxu0 0
  %157 = vmatprep.subr.bf16.mxu0 0
  %158 = vmatpush1.bf16.msra.mxu0 0
  %159 = vmatprep.subr.bf16.mxu0 0
  %160 = vmatpush1.bf16.msra.mxu0 0
  %161 = vmatprep.mubr.bf16.mxu0 %v124
  %162 = vmatmul.mubr.bf16.gmra.mrb[0].mxu0 %v62
  %v163 = vpop.f32.mrb[0].mxu0
  %v164 = vadd.f32 %v48, %v163
  %v165 = vpop.f32.mrb[0].mxu0
  %v166 = vpop.f32.mrb[0].mxu0
  %v167 = vadd.f32 %v48, %v166
  %v168 = vpop.f32.mrb[0].mxu0
  %169 = vmatprep.mubr.bf16.mxu0 %v127
  %170 = vmatmul.mubr.bf16.gmra.mrb[0].mxu0 %v64
  %v171 = vpop.f32.mrb[0].mxu0
  %v172 = vadd.f32 %v48, %v171
  %v173 = vpop.f32.mrb[0].mxu0
  %v174 = vpop.f32.mrb[0].mxu0
  %v175 = vadd.f32 %v48, %v174
  %v176 = vpop.f32.mrb[0].mxu0
  %177 = vdwg.mxu0
  %vm178 = vcmp.ge.f32.partialorder %v164, 0.0
  %vm179 = vcmp.ge.f32.partialorder %v167, 0.0
  %vm180 = vcmp.ge.f32.partialorder %v172, 0.0
  %vm181 = vcmp.ge.f32.partialorder %v175, 0.0
  %v182 = vmul.f32 %v164, 0.2
  %v183 = vmul.f32 %v167, 0.2
  %v184 = vmul.f32 %v172, 0.2
  %v185 = vmul.f32 %v175, 0.2
  %v186 = vsel %vm178, %v164, %v182
  %v187 = vsel %vm179, %v167, %v183
  %v188 = vsel %vm180, %v172, %v184
  %v189 = vsel %vm181, %v175, %v185
  %v190 = vld [vmem:[%s3] sm:$0x1]
  %v192 = vlaneseq
  %v193 = vshrl.u32 %v192, 7
  %v194 = vsub.s32 0, %v193
  %v195 = vrot.slane %v190, %v194
  %v197 = vmul.f32 %v186, %v195
  %v198 = vmul.f32 %v187, %v195
  %v199 = vmul.f32 %v188, %v195
  %v200 = vmul.f32 %v189, %v195
  %v201 = vld [vmem:[%s4] sm:$0x1]
  %v203 = vlaneseq
  %v204 = vshrl.u32 %v203, 7
  %v205 = vsub.s32 0, %v204
  %v206 = vrot.slane %v201, %v205
  %v208 = vadd.f32 %v197, %v206
  %v209 = vadd.f32 %v198, %v206
  %v210 = vadd.f32 %v199, %v206
  %v211 = vadd.f32 %v200, %v206
  %vm212 = vcmask 261120
  %213 = vst.msk [vmem:[%s5] sm:$0xff] %vm212, %v208
  %214 = vst.msk [vmem:[%s5 + $0x8] sm:$0xff] %vm212, %v209
  %215 = vst.msk [vmem:[%s5 + $0x10] sm:$0xff] %vm212, %v210
  %216 = vst.msk [vmem:[%s5 + $0x18] sm:$0xff] %vm212, %v211
  // Predicated region
  $region22: #{discriminator_forward.6} parent=0 // pred_check
    _
  $region23: #{discriminator_forward.6} parent=0 // pred_check_branch
    %218 = sbr.rel (0) target = $region25
  $region24: #{discriminator_forward.6} parent=0 // pred_region
    _
  $region25: #{discriminator_forward.6} parent=0 // pred_fallthru
    _
  // Predicated region
  $region26: #{discriminator_forward.6} parent=0 // pred_check
    _
  $region27: #{discriminator_forward.6} parent=0 // pred_check_branch
    %220 = sbr.rel (0) target = $region29
  $region28: #{discriminator_forward.6} parent=0 // pred_region
    _
  $region29: #{discriminator_forward.6} parent=0 // pred_fallthru
    _

// kernel: discriminator_forward.7
$region0: #{discriminator_forward.7}
  #allocation0 [shape = 'u32[]', space=smem, size = 0x4, offset = 0x4, fixed_abs, tag = 'smem constant byte address 0x4 - core index']
  #allocation1 [shape = 'u32[144,128]{1,0:T(1,128)}', space=vmem, size = 0x12000, scoped, tag = 'internal scratch']
  %s0 = inlined_call_operand.vmem [shape: bf16[8,288], index: 0, kind: input, shape index: {}]
  %s1 = inlined_call_operand.vmem [shape: bf16[288,64], index: 1, kind: input, shape index: {}]
  %s2 = inlined_call_operand.vmem [shape: f32[1,64], index: 2, kind: input, shape index: {}]
  %s3 = inlined_call_operand.vmem [shape: f32[1,64], index: 3, kind: input, shape index: {}]
  %s4 = inlined_call_operand.vmem [shape: f32[1,64], index: 4, kind: input, shape index: {}]
  %s5 = inlined_call_operand.vmem [shape: f32[8,64], index: 5, kind: output, shape index: {}]
  %s6 = sld [smem:[#allocation0]]
  $region30: #{discriminator_forward.7} parent=0
    _
  %s8 = ssub.s32 1, %s6
  %s9 = scalar_select 0, %s8, %s6
  // Predicated region
  $region2: #{discriminator_forward.7} parent=0 // pred_check
    _
  $region3: #{discriminator_forward.7} parent=0 // pred_check_branch
    %11 = sbr.rel (0) target = $region5
  $region4: #{discriminator_forward.7} parent=0 // pred_region
    _
  $region5: #{discriminator_forward.7} parent=0 // pred_fallthru
    _
  // Predicated region
  $region6: #{discriminator_forward.7} parent=0 // pred_check
    _
  $region7: #{discriminator_forward.7} parent=0 // pred_check_branch
    %13 = sbr.rel (0) target = $region9
  $region8: #{discriminator_forward.7} parent=0 // pred_region
    _
  $region9: #{discriminator_forward.7} parent=0 // pred_fallthru
    _
  // Predicated region
  $region10: #{discriminator_forward.7} parent=0 // pred_check
    _
  $region11: #{discriminator_forward.7} parent=0 // pred_check_branch
    %15 = sbr.rel (0) target = $region13
  $region12: #{discriminator_forward.7} parent=0 // pred_region
    _
  $region13: #{discriminator_forward.7} parent=0 // pred_fallthru
    _
  // Predicated region
  $region14: #{discriminator_forward.7} parent=0 // pred_check
    _
  $region15: #{discriminator_forward.7} parent=0 // pred_check_branch
    %17 = sbr.rel (0) target = $region17
  $region16: #{discriminator_forward.7} parent=0 // pred_region
    _
  $region17: #{discriminator_forward.7} parent=0 // pred_fallthru
    _
  // Predicated region
  $region18: #{discriminator_forward.7} parent=0 // pred_check
    _
  $region19: #{discriminator_forward.7} parent=0 // pred_check_branch
    %19 = sbr.rel (0) target = $region21
  $region20: #{discriminator_forward.7} parent=0 // pred_region
    _
  $region21: #{discriminator_forward.7} parent=0 // pred_fallthru
    _
  %v21 = vld [vmem:[%s0] sm:$0xff]
  %v22 = vld [vmem:[%s0 + $0x8] sm:$0xf]
  %v23 = vld [vmem:[%s1] sm:$0xf]
  %v24 = vld [vmem:[%s1 + $0x4] sm:$0xf]
  %v25 = vld [vmem:[%s1 + $0x8] sm:$0xf]
  %v26 = vld [vmem:[%s1 + $0xc] sm:$0xf]
  %v27 = vld [vmem:[%s1 + $0x10] sm:$0xf]
  %v28 = vld [vmem:[%s1 + $0x14] sm:$0xf]
  %v29 = vld [vmem:[%s1 + $0x18] sm:$0xf]
  %v30 = vld [vmem:[%s1 + $0x1c] sm:$0xf]
  %v31 = vld [vmem:[%s1 + $0x20] sm:$0xf]
  %v32 = vld [vmem:[%s1 + $0x24] sm:$0xf]
  %v33 = vld [vmem:[%s1 + $0x28] sm:$0xf]
  %v34 = vld [vmem:[%s1 + $0x2c] sm:$0xf]
  %v35 = vld [vmem:[%s1 + $0x30] sm:$0xf]
  %v36 = vld [vmem:[%s1 + $0x34] sm:$0xf]
  %v37 = vld [vmem:[%s1 + $0x38] sm:$0xf]
  %v38 = vld [vmem:[%s1 + $0x3c] sm:$0xf]
  %v39 = vld [vmem:[%s1 + $0x40] sm:$0xf]
  %v40 = vld [vmem:[%s1 + $0x44] sm:$0xf]
  %v41 = vld [vmem:[%s1 + $0x48] sm:$0xf]
  %v42 = vld [vmem:[%s1 + $0x4c] sm:$0xf]
  %v43 = vld [vmem:[%s1 + $0x50] sm:$0xf]
  %v44 = vld [vmem:[%s1 + $0x54] sm:$0xf]
  %v45 = vld [vmem:[%s1 + $0x58] sm:$0xf]
  %v46 = vld [vmem:[%s1 + $0x5c] sm:$0xf]
  %v47 = vld [vmem:[%s1 + $0x60] sm:$0xf]
  %v48 = vld [vmem:[%s1 + $0x64] sm:$0xf]
  %v49 = vld [vmem:[%s1 + $0x68] sm:$0xf]
  %v50 = vld [vmem:[%s1 + $0x6c] sm:$0xf]
  %v51 = vld [vmem:[%s1 + $0x70] sm:$0xf]
  %v52 = vld [vmem:[%s1 + $0x74] sm:$0xf]
  %v53 = vld [vmem:[%s1 + $0x78] sm:$0xf]
  %v54 = vld [vmem:[%s1 + $0x7c] sm:$0xf]
  %v55 = vld [vmem:[%s1 + $0x80] sm:$0xf]
  %v56 = vld [vmem:[%s1 + $0x84] sm:$0xf]
  %v57 = vld [vmem:[%s1 + $0x88] sm:$0xf]
  %v58 = vld [vmem:[%s1 + $0x8c] sm:$0xf]
  %v59 = vld [vmem:[%s2] sm:$0x1]
  %v61 = vlaneseq
  %v62 = vshrl.u32 %v61, 7
  %v63 = vsub.s32 0, %v62
  %v64 = vrot.slane %v59, %v63
  %v68 = vunpack.c.l.b16 %v21
  %v69 = vunpack.c.h.b16 %v21
  %v70 = vunpack.c.l.b16 %v22
  %v71 = vpack.c.b16 %v68, %v68
  %v72 = vpack.c.b16 %v69, %v69
  %v73 = vpack.c.b16 %v70, %v70
  %v112 = vunpack.c.l.b16 %v23
  %v113 = vunpack.c.l.b16 %v24
  %v114 = vunpack.c.l.b16 %v25
  %v115 = vunpack.c.l.b16 %v26
  %v116 = vunpack.c.l.b16 %v27
  %v117 = vunpack.c.l.b16 %v28
  %v118 = vunpack.c.l.b16 %v29
  %v119 = vunpack.c.l.b16 %v30
  %v120 = vunpack.c.l.b16 %v31
  %v121 = vunpack.c.l.b16 %v32
  %v122 = vunpack.c.l.b16 %v33
  %v123 = vunpack.c.l.b16 %v34
  %v124 = vunpack.c.l.b16 %v35
  %v125 = vunpack.c.l.b16 %v36
  %v126 = vunpack.c.l.b16 %v37
  %v127 = vunpack.c.l.b16 %v38
  %v128 = vunpack.c.l.b16 %v39
  %v129 = vunpack.c.l.b16 %v40
  %v130 = vunpack.c.l.b16 %v41
  %v131 = vunpack.c.l.b16 %v42
  %v132 = vunpack.c.l.b16 %v43
  %v133 = vunpack.c.l.b16 %v44
  %v134 = vunpack.c.l.b16 %v45
  %v135 = vunpack.c.l.b16 %v46
  %v136 = vunpack.c.l.b16 %v47
  %v137 = vunpack.c.l.b16 %v48
  %v138 = vunpack.c.l.b16 %v49
  %v139 = vunpack.c.l.b16 %v50
  %v140 = vunpack.c.l.b16 %v51
  %v141 = vunpack.c.l.b16 %v52
  %v142 = vunpack.c.l.b16 %v53
  %v143 = vunpack.c.l.b16 %v54
  %v144 = vunpack.c.l.b16 %v55
  %v145 = vunpack.c.l.b16 %v56
  %v146 = vunpack.c.l.b16 %v57
  %v147 = vunpack.c.l.b16 %v58
  %v148 = vpack.c.b16 %v113, %v112
  %v149 = vpack.c.b16 %v115, %v114
  %v150 = vpack.c.b16 %v117, %v116
  %v151 = vpack.c.b16 %v119, %v118
  %v152 = vpack.c.b16 %v121, %v120
  %v153 = vpack.c.b16 %v123, %v122
  %v154 = vpack.c.b16 %v125, %v124
  %v155 = vpack.c.b16 %v127, %v126
  %v156 = vpack.c.b16 %v129, %v128
  %v157 = vpack.c.b16 %v131, %v130
  %v158 = vpack.c.b16 %v133, %v132
  %v159 = vpack.c.b16 %v135, %v134
  %v160 = vpack.c.b16 %v137, %v136
  %v161 = vpack.c.b16 %v139, %v138
  %v162 = vpack.c.b16 %v141, %v140
  %v163 = vpack.c.b16 %v143, %v142
  %v164 = vpack.c.b16 %v145, %v144
  %v165 = vpack.c.b16 %v147, %v146
  %vm184 = vcmask 261120
  %v186 = vsel %vm184, %v73, 0
  %188 = vmatprep.subr.bf16.mxu0 0
  %189 = vmatpush1.bf16.msra.mxu0 %v148
  %190 = vmatprep.subr.bf16.mxu0 0
  %191 = vmatpush1.bf16.msra.mxu0 %v149
  %192 = vmatprep.subr.bf16.mxu0 0
  %193 = vmatpush1.bf16.msra.mxu0 %v150
  %194 = vmatprep.subr.bf16.mxu0 0
  %195 = vmatpush1.bf16.msra.mxu0 %v151
  %196 = vmatprep.subr.bf16.mxu0 0
  %197 = vmatpush1.bf16.msra.mxu0 %v152
  %198 = vmatprep.subr.bf16.mxu0 0
  %199 = vmatpush1.bf16.msra.mxu0 %v153
  %200 = vmatprep.subr.bf16.mxu0 0
  %201 = vmatpush1.bf16.msra.mxu0 %v154
  %202 = vmatprep.subr.bf16.mxu0 0
  %203 = vmatpush1.bf16.msra.mxu0 %v155
  %204 = vmatprep.subr.bf16.mxu0 0
  %205 = vmatpush1.bf16.msra.mxu0 %v156
  %206 = vmatprep.subr.bf16.mxu0 0
  %207 = vmatpush1.bf16.msra.mxu0 %v157
  %208 = vmatprep.subr.bf16.mxu0 0
  %209 = vmatpush1.bf16.msra.mxu0 %v158
  %210 = vmatprep.subr.bf16.mxu0 0
  %211 = vmatpush1.bf16.msra.mxu0 %v159
  %212 = vmatprep.subr.bf16.mxu0 0
  %213 = vmatpush1.bf16.msra.mxu0 %v160
  %214 = vmatprep.subr.bf16.mxu0 0
  %215 = vmatpush1.bf16.msra.mxu0 %v161
  %216 = vmatprep.subr.bf16.mxu0 0
  %217 = vmatpush1.bf16.msra.mxu0 %v162
  %218 = vmatprep.subr.bf16.mxu0 0
  %219 = vmatpush1.bf16.msra.mxu0 %v163
  %220 = vmatprep.mubr.bf16.mxu0 %v72
  %221 = vmatmul.mubr.bf16.gmra.mrb[0].mxu0 %v71
  %v222 = vpop.f32.mrb[0].mxu0
  %v223 = vadd.f32 %v64, %v222
  %v224 = vpop.f32.mrb[0].mxu0
  %v225 = vpop.f32.mrb[0].mxu0
  %v226 = vpop.f32.mrb[0].mxu0
  %227 = vdwg.mxu0
  %228 = vmatprep.subr.bf16.mxu0 0
  %229 = vmatpush1.bf16.msra.mxu0 %v164
  %230 = vmatprep.subr.bf16.mxu0 0
  %231 = vmatpush1.bf16.msra.mxu0 %v165
  %232 = vmatprep.subr.bf16.mxu0 0
  %233 = vmatpush1.bf16.msra.mxu0 0
  %234 = vmatprep.subr.bf16.mxu0 0
  %235 = vmatpush1.bf16.msra.mxu0 0
  %236 = vmatprep.subr.bf16.mxu0 0
  %237 = vmatpush1.bf16.msra.mxu0 0
  %238 = vmatprep.subr.bf16.mxu0 0
  %239 = vmatpush1.bf16.msra.mxu0 0
  %240 = vmatprep.subr.bf16.mxu0 0
  %241 = vmatpush1.bf16.msra.mxu0 0
  %242 = vmatprep.subr.bf16.mxu0 0
  %243 = vmatpush1.bf16.msra.mxu0 0
  %244 = vmatprep.subr.bf16.mxu0 0
  %245 = vmatpush1.bf16.msra.mxu0 0
  %246 = vmatprep.subr.bf16.mxu0 0
  %247 = vmatpush1.bf16.msra.mxu0 0
  %248 = vmatprep.subr.bf16.mxu0 0
  %249 = vmatpush1.bf16.msra.mxu0 0
  %250 = vmatprep.subr.bf16.mxu0 0
  %251 = vmatpush1.bf16.msra.mxu0 0
  %252 = vmatprep.subr.bf16.mxu0 0
  %253 = vmatpush1.bf16.msra.mxu0 0
  %254 = vmatprep.subr.bf16.mxu0 0
  %255 = vmatpush1.bf16.msra.mxu0 0
  %256 = vmatprep.subr.bf16.mxu0 0
  %257 = vmatpush1.bf16.msra.mxu0 0
  %258 = vmatprep.subr.bf16.mxu0 0
  %259 = vmatpush1.bf16.msra.mxu0 0
  %260 = vmatprep.mubr.bf16.mxu0 0
  %261 = vmatmul.mubr.bf16.gmra.mrb[0].mxu0 %v186
  %v262 = vpop.f32.mrb[0].mxu0
  %v263 = vadd.f32 %v223, %v262
  %v264 = vpop.f32.mrb[0].mxu0
  %v265 = vpop.f32.mrb[0].mxu0
  %v266 = vpop.f32.mrb[0].mxu0
  %267 = vdwg.mxu0
  %vm268 = vcmp.ge.f32.partialorder %v263, 0.0
  %v269 = vmul.f32 %v263, 0.2
  %v270 = vsel %vm268, %v263, %v269
  %v271 = vld [vmem:[%s3] sm:$0x1]
  %v273 = vlaneseq
  %v274 = vshrl.u32 %v273, 7
  %v275 = vsub.s32 0, %v274
  %v276 = vrot.slane %v271, %v275
  %v278 = vmul.f32 %v270, %v276
  %v279 = vld [vmem:[%s4] sm:$0x1]
  %v281 = vlaneseq
  %v282 = vshrl.u32 %v281, 7
  %v283 = vsub.s32 0, %v282
  %v284 = vrot.slane %v279, %v283
  %v286 = vadd.f32 %v278, %v284
  %vm287 = vcmask 523264
  %288 = vst.msk [vmem:[%s5] sm:$0xff] %vm287, %v286
  // Predicated region
  $region22: #{discriminator_forward.7} parent=0 // pred_check
    _
  $region23: #{discriminator_forward.7} parent=0 // pred_check_branch
    %290 = sbr.rel (0) target = $region25
  $region24: #{discriminator_forward.7} parent=0 // pred_region
    _
  $region25: #{discriminator_forward.7} parent=0 // pred_fallthru
    _
  // Predicated region
  $region26: #{discriminator_forward.7} parent=0 // pred_check
    _
  $region27: #{discriminator_forward.7} parent=0 // pred_check_branch
    %292 = sbr.rel (0) target = $region29
  $region28: #{discriminator_forward.7} parent=0 // pred_region
    _
  $region29: #{discriminator_forward.7} parent=0 // pred_fallthru
    _

// kernel: discriminator_forward.9
$region0: #{discriminator_forward.9}
  #allocation0 [shape = 'u32[]', space=smem, size = 0x4, offset = 0x4, fixed_abs, tag = 'smem constant byte address 0x4 - core index']
  #allocation1 [shape = 'u32[144,128]{1,0:T(1,128)}', space=vmem, size = 0x12000, scoped, tag = 'internal scratch']
  #allocation2 [shape = 'f32[1,1]{1,0:T(1,128)S(1)}', space=vmem, size = 0x200, scoped, tag = 'scoped memory for discriminator_forward.9']
  %s0 = inlined_call_operand.vmem [shape: f32[2,128], index: 0, kind: input, shape index: {}]
  %s1 = inlined_call_operand.vmem [shape: f32[128,1], index: 1, kind: input, shape index: {}]
  %s2 = inlined_call_operand.<no memory space> [shape: f32[1,1], index: 2, kind: input, shape index: {}]
  %s3 = inlined_call_operand.vmem [shape: f32[2,1], index: 3, kind: output, shape index: {}]
  %s4 = sld [smem:[#allocation0]]
  $region22: #{discriminator_forward.9} parent=0
    _
  %s6 = ssub.s32 1, %s4
  %s7 = scalar_select 0, %s6, %s4
  %v8 = vstv %s2
  %9 = vst [vmem:[#allocation2] sm:$0x1] %v8
  // Predicated region
  $region2: #{discriminator_forward.9} parent=0 // pred_check
    _
  $region3: #{discriminator_forward.9} parent=0 // pred_check_branch
    %11 = sbr.rel (0) target = $region5
  $region4: #{discriminator_forward.9} parent=0 // pred_region
    _
  $region5: #{discriminator_forward.9} parent=0 // pred_fallthru
    _
  // Predicated region
  $region6: #{discriminator_forward.9} parent=0 // pred_check
    _
  $region7: #{discriminator_forward.9} parent=0 // pred_check_branch
    %13 = sbr.rel (0) target = $region9
  $region8: #{discriminator_forward.9} parent=0 // pred_region
    _
  $region9: #{discriminator_forward.9} parent=0 // pred_fallthru
    _
  // Predicated region
  $region10: #{discriminator_forward.9} parent=0 // pred_check
    _
  $region11: #{discriminator_forward.9} parent=0 // pred_check_branch
    %15 = sbr.rel (0) target = $region13
  $region12: #{discriminator_forward.9} parent=0 // pred_region
    _
  $region13: #{discriminator_forward.9} parent=0 // pred_fallthru
    _
  %v16 = vld [vmem:[%s0] sm:$0x3]
  %v17 = vld [vmem:[%s1] sm:$0xff]
  %v18 = vld [vmem:[%s1 + $0x8] sm:$0xff]
  %v19 = vld [vmem:[%s1 + $0x10] sm:$0xff]
  %v20 = vld [vmem:[%s1 + $0x18] sm:$0xff]
  %v21 = vld [vmem:[%s1 + $0x20] sm:$0xff]
  %v22 = vld [vmem:[%s1 + $0x28] sm:$0xff]
  %v23 = vld [vmem:[%s1 + $0x30] sm:$0xff]
  %v24 = vld [vmem:[%s1 + $0x38] sm:$0xff]
  %v25 = vld [vmem:[%s1 + $0x40] sm:$0xff]
  %v26 = vld [vmem:[%s1 + $0x48] sm:$0xff]
  %v27 = vld [vmem:[%s1 + $0x50] sm:$0xff]
  %v28 = vld [vmem:[%s1 + $0x58] sm:$0xff]
  %v29 = vld [vmem:[%s1 + $0x60] sm:$0xff]
  %v30 = vld [vmem:[%s1 + $0x68] sm:$0xff]
  %v31 = vld [vmem:[%s1 + $0x70] sm:$0xff]
  %v32 = vld [vmem:[%s1 + $0x78] sm:$0xff]
  %v33 = vld [vmem:[#allocation2] sm:$0x1]
  %v35 = vlaneseq
  %v36 = vshrl.u32 %v35, 7
  %v37 = vsub.s32 0, %v36
  %v38 = vrot.slane %v33, %v37
  %40 = vmatprep.subr.mxu0 0.0
  %41 = vmatpush1.msra.mxu0 %v17
  %42 = vmatprep.subr.mxu0 0.0
  %43 = vmatpush1.msra.mxu0 %v18
  %44 = vmatprep.subr.mxu0 0.0
  %45 = vmatpush1.msra.mxu0 %v19
  %46 = vmatprep.subr.mxu0 0.0
  %47 = vmatpush1.msra.mxu0 %v20
  %48 = vmatprep.subr.mxu0 0.0
  %49 = vmatpush1.msra.mxu0 %v21
  %50 = vmatprep.subr.mxu0 0.0
  %51 = vmatpush1.msra.mxu0 %v22
  %52 = vmatprep.subr.mxu0 0.0
  %53 = vmatpush1.msra.mxu0 %v23
  %54 = vmatprep.subr.mxu0 0.0
  %55 = vmatpush1.msra.mxu0 %v24
  %56 = vmatprep.subr.mxu0 0.0
  %57 = vmatpush1.msra.mxu0 %v25
  %58 = vmatprep.subr.mxu0 0.0
  %59 = vmatpush1.msra.mxu0 %v26
  %60 = vmatprep.subr.mxu0 0.0
  %61 = vmatpush1.msra.mxu0 %v27
  %62 = vmatprep.subr.mxu0 0.0
  %63 = vmatpush1.msra.mxu0 %v28
  %64 = vmatprep.subr.mxu0 0.0
  %65 = vmatpush1.msra.mxu0 %v29
  %66 = vmatprep.subr.mxu0 0.0
  %67 = vmatpush1.msra.mxu0 %v30
  %68 = vmatprep.subr.mxu0 0.0
  %69 = vmatpush1.msra.mxu0 %v31
  %70 = vmatprep.subr.mxu0 0.0
  %71 = vmatpush1.msra.mxu0 %v32
  %72 = vmatprep.subr.mxu0 0.0
  %73 = vmatpush1.msra.mxu0 0.0
  %74 = vmatprep.subr.mxu0 0.0
  %75 = vmatpush1.msra.mxu0 0.0
  %76 = vmatprep.subr.mxu0 0.0
  %77 = vmatpush1.msra.mxu0 0.0
  %78 = vmatprep.subr.mxu0 0.0
  %79 = vmatpush1.msra.mxu0 0.0
  %80 = vmatprep.subr.mxu0 0.0
  %81 = vmatpush1.msra.mxu0 0.0
  %82 = vmatprep.subr.mxu0 0.0
  %83 = vmatpush1.msra.mxu0 0.0
  %84 = vmatprep.subr.mxu0 0.0
  %85 = vmatpush1.msra.mxu0 0.0
  %86 = vmatprep.subr.mxu0 0.0
  %87 = vmatpush1.msra.mxu0 0.0
  %88 = vmatprep.subr.mxu0 0.0
  %89 = vmatpush1.msra.mxu0 0.0
  %90 = vmatprep.subr.mxu0 0.0
  %91 = vmatpush1.msra.mxu0 0.0
  %92 = vmatprep.subr.mxu0 0.0
  %93 = vmatpush1.msra.mxu0 0.0
  %94 = vmatprep.subr.mxu0 0.0
  %95 = vmatpush1.msra.mxu0 0.0
  %96 = vmatprep.subr.mxu0 0.0
  %97 = vmatpush1.msra.mxu0 0.0
  %98 = vmatprep.subr.mxu0 0.0
  %99 = vmatpush1.msra.mxu0 0.0
  %100 = vmatprep.subr.mxu0 0.0
  %101 = vmatpush1.msra.mxu0 0.0
  %102 = vmatprep.subr.mxu0 0.0
  %103 = vmatpush1.msra.mxu0 0.0
  %104 = vmatprep.mubr.f32.mxu0 0.0
  %105 = vmatmul.mubr.f32.gmra.mrb[0].mxu0 %v16
  %v106 = vpop.f32.mrb[0].mxu0
  %v107 = vadd.f32 %v38, %v106
  %v108 = vpop.f32.mrb[0].mxu0
  %109 = vdwg.mxu0
  %vm110 = vcmask 1024
  %111 = vst.msk [vmem:[%s3] sm:$0x3] %vm110, %v107
  // Predicated region
  $region14: #{discriminator_forward.9} parent=0 // pred_check
    _
  $region15: #{discriminator_forward.9} parent=0 // pred_check_branch
    %113 = sbr.rel (0) target = $region17
  $region16: #{discriminator_forward.9} parent=0 // pred_region
    _
  $region17: #{discriminator_forward.9} parent=0 // pred_fallthru
    _
  // Predicated region
  $region18: #{discriminator_forward.9} parent=0 // pred_check
    _
  $region19: #{discriminator_forward.9} parent=0 // pred_check_branch
    %115 = sbr.rel (0) target = $region21
  $region20: #{discriminator_forward.9} parent=0 // pred_region
    _
  $region21: #{discriminator_forward.9} parent=0 // pred_fallthru
    _

// kernel: discriminator_forward.8
$region0: #{discriminator_forward.8}
  #allocation0 [shape = 'u32[]', space=smem, size = 0x4, offset = 0x4, fixed_abs, tag = 'smem constant byte address 0x4 - core index']
  #allocation1 [shape = 'u32[144,128]{1,0:T(1,128)}', space=vmem, size = 0x12000, scoped, tag = 'internal scratch']
  %s0 = inlined_call_operand.vmem [shape: bf16[2,576], index: 0, kind: input, shape index: {}]
  %s1 = inlined_call_operand.vmem [shape: bf16[576,128], index: 1, kind: input, shape index: {}]
  %s2 = inlined_call_operand.vmem [shape: f32[1,128], index: 2, kind: input, shape index: {}]
  %s3 = inlined_call_operand.vmem [shape: f32[1,128], index: 3, kind: input, shape index: {}]
  %s4 = inlined_call_operand.vmem [shape: f32[1,128], index: 4, kind: input, shape index: {}]
  %s5 = inlined_call_operand.vmem [shape: f32[2,128], index: 5, kind: output, shape index: {}]
  %s6 = sld [smem:[#allocation0]]
  $region30: #{discriminator_forward.8} parent=0
    _
  %s8 = ssub.s32 1, %s6
  %s9 = scalar_select 0, %s8, %s6
  // Predicated region
  $region2: #{discriminator_forward.8} parent=0 // pred_check
    _
  $region3: #{discriminator_forward.8} parent=0 // pred_check_branch
    %11 = sbr.rel (0) target = $region5
  $region4: #{discriminator_forward.8} parent=0 // pred_region
    _
  $region5: #{discriminator_forward.8} parent=0 // pred_fallthru
    _
  // Predicated region
  $region6: #{discriminator_forward.8} parent=0 // pred_check
    _
  $region7: #{discriminator_forward.8} parent=0 // pred_check_branch
    %13 = sbr.rel (0) target = $region9
  $region8: #{discriminator_forward.8} parent=0 // pred_region
    _
  $region9: #{discriminator_forward.8} parent=0 // pred_fallthru
    _
  // Predicated region
  $region10: #{discriminator_forward.8} parent=0 // pred_check
    _
  $region11: #{discriminator_forward.8} parent=0 // pred_check_branch
    %15 = sbr.rel (0) target = $region13
  $region12: #{discriminator_forward.8} parent=0 // pred_region
    _
  $region13: #{discriminator_forward.8} parent=0 // pred_fallthru
    _
  // Predicated region
  $region14: #{discriminator_forward.8} parent=0 // pred_check
    _
  $region15: #{discriminator_forward.8} parent=0 // pred_check_branch
    %17 = sbr.rel (0) target = $region17
  $region16: #{discriminator_forward.8} parent=0 // pred_region
    _
  $region17: #{discriminator_forward.8} parent=0 // pred_fallthru
    _
  // Predicated region
  $region18: #{discriminator_forward.8} parent=0 // pred_check
    _
  $region19: #{discriminator_forward.8} parent=0 // pred_check_branch
    %19 = sbr.rel (0) target = $region21
  $region20: #{discriminator_forward.8} parent=0 // pred_region
    _
  $region21: #{discriminator_forward.8} parent=0 // pred_fallthru
    _
  %v21 = vld [vmem:[%s0] sm:$0x1f]
  %v22 = vld [vmem:[%s1] sm:$0xf]
  %v23 = vld [vmem:[%s1 + $0x4] sm:$0xf]
  %v24 = vld [vmem:[%s1 + $0x8] sm:$0xf]
  %v25 = vld [vmem:[%s1 + $0xc] sm:$0xf]
  %v26 = vld [vmem:[%s1 + $0x10] sm:$0xf]
  %v27 = vld [vmem:[%s1 + $0x14] sm:$0xf]
  %v28 = vld [vmem:[%s1 + $0x18] sm:$0xf]
  %v29 = vld [vmem:[%s1 + $0x1c] sm:$0xf]
  %v30 = vld [vmem:[%s1 + $0x20] sm:$0xf]
  %v31 = vld [vmem:[%s1 + $0x24] sm:$0xf]
  %v32 = vld [vmem:[%s1 + $0x28] sm:$0xf]
  %v33 = vld [vmem:[%s1 + $0x2c] sm:$0xf]
  %v34 = vld [vmem:[%s1 + $0x30] sm:$0xf]
  %v35 = vld [vmem:[%s1 + $0x34] sm:$0xf]
  %v36 = vld [vmem:[%s1 + $0x38] sm:$0xf]
  %v37 = vld [vmem:[%s1 + $0x3c] sm:$0xf]
  %v38 = vld [vmem:[%s1 + $0x40] sm:$0xf]
  %v39 = vld [vmem:[%s1 + $0x44] sm:$0xf]
  %v40 = vld [vmem:[%s1 + $0x48] sm:$0xf]
  %v41 = vld [vmem:[%s1 + $0x4c] sm:$0xf]
  %v42 = vld [vmem:[%s1 + $0x50] sm:$0xf]
  %v43 = vld [vmem:[%s1 + $0x54] sm:$0xf]
  %v44 = vld [vmem:[%s1 + $0x58] sm:$0xf]
  %v45 = vld [vmem:[%s1 + $0x5c] sm:$0xf]
  %v46 = vld [vmem:[%s1 + $0x60] sm:$0xf]
  %v47 = vld [vmem:[%s1 + $0x64] sm:$0xf]
  %v48 = vld [vmem:[%s1 + $0x68] sm:$0xf]
  %v49 = vld [vmem:[%s1 + $0x6c] sm:$0xf]
  %v50 = vld [vmem:[%s1 + $0x70] sm:$0xf]
  %v51 = vld [vmem:[%s1 + $0x74] sm:$0xf]
  %v52 = vld [vmem:[%s1 + $0x78] sm:$0xf]
  %v53 = vld [vmem:[%s1 + $0x7c] sm:$0xf]
  %v54 = vld [vmem:[%s1 + $0x80] sm:$0xf]
  %v55 = vld [vmem:[%s1 + $0x84] sm:$0xf]
  %v56 = vld [vmem:[%s1 + $0x88] sm:$0xf]
  %v57 = vld [vmem:[%s1 + $0x8c] sm:$0xf]
  %v58 = vld [vmem:[%s1 + $0x90] sm:$0xf]
  %v59 = vld [vmem:[%s1 + $0x94] sm:$0xf]
  %v60 = vld [vmem:[%s1 + $0x98] sm:$0xf]
  %v61 = vld [vmem:[%s1 + $0x9c] sm:$0xf]
  %v62 = vld [vmem:[%s1 + $0xa0] sm:$0xf]
  %v63 = vld [vmem:[%s1 + $0xa4] sm:$0xf]
  %v64 = vld [vmem:[%s1 + $0xa8] sm:$0xf]
  %v65 = vld [vmem:[%s1 + $0xac] sm:$0xf]
  %v66 = vld [vmem:[%s1 + $0xb0] sm:$0xf]
  %v67 = vld [vmem:[%s1 + $0xb4] sm:$0xf]
  %v68 = vld [vmem:[%s1 + $0xb8] sm:$0xf]
  %v69 = vld [vmem:[%s1 + $0xbc] sm:$0xf]
  %v70 = vld [vmem:[%s1 + $0xc0] sm:$0xf]
  %v71 = vld [vmem:[%s1 + $0xc4] sm:$0xf]
  %v72 = vld [vmem:[%s1 + $0xc8] sm:$0xf]
  %v73 = vld [vmem:[%s1 + $0xcc] sm:$0xf]
  %v74 = vld [vmem:[%s1 + $0xd0] sm:$0xf]
  %v75 = vld [vmem:[%s1 + $0xd4] sm:$0xf]
  %v76 = vld [vmem:[%s1 + $0xd8] sm:$0xf]
  %v77 = vld [vmem:[%s1 + $0xdc] sm:$0xf]
  %v78 = vld [vmem:[%s1 + $0xe0] sm:$0xf]
  %v79 = vld [vmem:[%s1 + $0xe4] sm:$0xf]
  %v80 = vld [vmem:[%s1 + $0xe8] sm:$0xf]
  %v81 = vld [vmem:[%s1 + $0xec] sm:$0xf]
  %v82 = vld [vmem:[%s1 + $0xf0] sm:$0xf]
  %v83 = vld [vmem:[%s1 + $0xf4] sm:$0xf]
  %v84 = vld [vmem:[%s1 + $0xf8] sm:$0xf]
  %v85 = vld [vmem:[%s1 + $0xfc] sm:$0xf]
  %v86 = vld [vmem:[%s1 + $0x100] sm:$0xf]
  %v87 = vld [vmem:[%s1 + $0x104] sm:$0xf]
  %v88 = vld [vmem:[%s1 + $0x108] sm:$0xf]
  %v89 = vld [vmem:[%s1 + $0x10c] sm:$0xf]
  %v90 = vld [vmem:[%s1 + $0x110] sm:$0xf]
  %v91 = vld [vmem:[%s1 + $0x114] sm:$0xf]
  %v92 = vld [vmem:[%s1 + $0x118] sm:$0xf]
  %v93 = vld [vmem:[%s1 + $0x11c] sm:$0xf]
  %v94 = vld [vmem:[%s2] sm:$0x1]
  %v96 = vlaneseq
  %v97 = vshrl.u32 %v96, 7
  %v98 = vsub.s32 0, %v97
  %v99 = vrot.slane %v94, %v98
  %v102 = vcombine.high %v21, %v21
  %v104 = vunpack.c.l.s4 1966171168
  %v105 = vunpack.c.0.s8 %v104
  %v106 = vlaneseq
  %v107 = vshrl.u32 %v106, 7
  %v108 = vsub.s32 %v105, %v107
  %v109 = vrot.slane %v21, %v108
  %v111 = vunpack.c.l.s4 1966171168
  %v112 = vunpack.c.0.s8 %v111
  %v113 = vlaneseq
  %v114 = vshrl.u32 %v113, 7
  %v115 = vsub.s32 %v112, %v114
  %v116 = vrot.slane %v102, %v115
  %v117 = vcombine.high %v109, %v109
  %v119 = vunpack.c.l.s4 1966171168
  %v120 = vunpack.c.0.s8 %v119
  %v121 = vlaneseq
  %v122 = vshrl.u32 %v121, 7
  %v123 = vsub.s32 %v120, %v122
  %v124 = vrot.slane %v109, %v123
  %v126 = vunpack.c.l.s4 1966171168
  %v127 = vunpack.c.0.s8 %v126
  %v128 = vlaneseq
  %v129 = vshrl.u32 %v128, 7
  %v130 = vsub.s32 %v127, %v129
  %v131 = vrot.slane %v116, %v130
  %v133 = vunpack.c.l.s4 1966171168
  %v134 = vunpack.c.0.s8 %v133
  %v135 = vlaneseq
  %v136 = vshrl.u32 %v135, 7
  %v137 = vsub.s32 %v134, %v136
  %v138 = vrot.slane %v117, %v137
  %v139 = vcombine.high %v124, %v124
  %v140 = vcombine.high %v138, %v138
  %v217 = vunpack.c.l.b16 %v22
  %v218 = vunpack.c.l.b16 %v23
  %v219 = vunpack.c.l.b16 %v24
  %v220 = vunpack.c.l.b16 %v25
  %v221 = vunpack.c.l.b16 %v26
  %v222 = vunpack.c.l.b16 %v27
  %v223 = vunpack.c.l.b16 %v28
  %v224 = vunpack.c.l.b16 %v29
  %v225 = vunpack.c.l.b16 %v30
  %v226 = vunpack.c.l.b16 %v31
  %v227 = vunpack.c.l.b16 %v32
  %v228 = vunpack.c.l.b16 %v33
  %v229 = vunpack.c.l.b16 %v34
  %v230 = vunpack.c.l.b16 %v35
  %v231 = vunpack.c.l.b16 %v36
  %v232 = vunpack.c.l.b16 %v37
  %v233 = vunpack.c.l.b16 %v38
  %v234 = vunpack.c.l.b16 %v39
  %v235 = vunpack.c.l.b16 %v40
  %v236 = vunpack.c.l.b16 %v41
  %v237 = vunpack.c.l.b16 %v42
  %v238 = vunpack.c.l.b16 %v43
  %v239 = vunpack.c.l.b16 %v44
  %v240 = vunpack.c.l.b16 %v45
  %v241 = vunpack.c.l.b16 %v46
  %v242 = vunpack.c.l.b16 %v47
  %v243 = vunpack.c.l.b16 %v48
  %v244 = vunpack.c.l.b16 %v49
  %v245 = vunpack.c.l.b16 %v50
  %v246 = vunpack.c.l.b16 %v51
  %v247 = vunpack.c.l.b16 %v52
  %v248 = vunpack.c.l.b16 %v53
  %v249 = vunpack.c.l.b16 %v54
  %v250 = vunpack.c.l.b16 %v55
  %v251 = vunpack.c.l.b16 %v56
  %v252 = vunpack.c.l.b16 %v57
  %v253 = vunpack.c.l.b16 %v58
  %v254 = vunpack.c.l.b16 %v59
  %v255 = vunpack.c.l.b16 %v60
  %v256 = vunpack.c.l.b16 %v61
  %v257 = vunpack.c.l.b16 %v62
  %v258 = vunpack.c.l.b16 %v63
  %v259 = vunpack.c.l.b16 %v64
  %v260 = vunpack.c.l.b16 %v65
  %v261 = vunpack.c.l.b16 %v66
  %v262 = vunpack.c.l.b16 %v67
  %v263 = vunpack.c.l.b16 %v68
  %v264 = vunpack.c.l.b16 %v69
  %v265 = vunpack.c.l.b16 %v70
  %v266 = vunpack.c.l.b16 %v71
  %v267 = vunpack.c.l.b16 %v72
  %v268 = vunpack.c.l.b16 %v73
  %v269 = vunpack.c.l.b16 %v74
  %v270 = vunpack.c.l.b16 %v75
  %v271 = vunpack.c.l.b16 %v76
  %v272 = vunpack.c.l.b16 %v77
  %v273 = vunpack.c.l.b16 %v78
  %v274 = vunpack.c.l.b16 %v79
  %v275 = vunpack.c.l.b16 %v80
  %v276 = vunpack.c.l.b16 %v81
  %v277 = vunpack.c.l.b16 %v82
  %v278 = vunpack.c.l.b16 %v83
  %v279 = vunpack.c.l.b16 %v84
  %v280 = vunpack.c.l.b16 %v85
  %v281 = vunpack.c.l.b16 %v86
  %v282 = vunpack.c.l.b16 %v87
  %v283 = vunpack.c.l.b16 %v88
  %v284 = vunpack.c.l.b16 %v89
  %v285 = vunpack.c.l.b16 %v90
  %v286 = vunpack.c.l.b16 %v91
  %v287 = vunpack.c.l.b16 %v92
  %v288 = vunpack.c.l.b16 %v93
  %v289 = vpack.c.b16 %v218, %v217
  %v290 = vpack.c.b16 %v220, %v219
  %v291 = vpack.c.b16 %v222, %v221
  %v292 = vpack.c.b16 %v224, %v223
  %v293 = vpack.c.b16 %v226, %v225
  %v294 = vpack.c.b16 %v228, %v227
  %v295 = vpack.c.b16 %v230, %v229
  %v296 = vpack.c.b16 %v232, %v231
  %v297 = vpack.c.b16 %v234, %v233
  %v298 = vpack.c.b16 %v236, %v235
  %v299 = vpack.c.b16 %v238, %v237
  %v300 = vpack.c.b16 %v240, %v239
  %v301 = vpack.c.b16 %v242, %v241
  %v302 = vpack.c.b16 %v244, %v243
  %v303 = vpack.c.b16 %v246, %v245
  %v304 = vpack.c.b16 %v248, %v247
  %v305 = vpack.c.b16 %v250, %v249
  %v306 = vpack.c.b16 %v252, %v251
  %v307 = vpack.c.b16 %v254, %v253
  %v308 = vpack.c.b16 %v256, %v255
  %v309 = vpack.c.b16 %v258, %v257
  %v310 = vpack.c.b16 %v260, %v259
  %v311 = vpack.c.b16 %v262, %v261
  %v312 = vpack.c.b16 %v264, %v263
  %v313 = vpack.c.b16 %v266, %v265
  %v314 = vpack.c.b16 %v268, %v267
  %v315 = vpack.c.b16 %v270, %v269
  %v316 = vpack.c.b16 %v272, %v271
  %v317 = vpack.c.b16 %v274, %v273
  %v318 = vpack.c.b16 %v276, %v275
  %v319 = vpack.c.b16 %v278, %v277
  %v320 = vpack.c.b16 %v280, %v279
  %v321 = vpack.c.b16 %v282, %v281
  %v322 = vpack.c.b16 %v284, %v283
  %v323 = vpack.c.b16 %v286, %v285
  %v324 = vpack.c.b16 %v288, %v287
  %vm361 = vcmask 523264
  %v363 = vsel %vm361, %v131, 0
  %365 = vmatprep.subr.bf16.mxu0 0
  %366 = vmatpush1.bf16.msra.mxu0 %v289
  %367 = vmatprep.subr.bf16.mxu0 0
  %368 = vmatpush1.bf16.msra.mxu0 %v290
  %369 = vmatprep.subr.bf16.mxu0 0
  %370 = vmatpush1.bf16.msra.mxu0 %v291
  %371 = vmatprep.subr.bf16.mxu0 0
  %372 = vmatpush1.bf16.msra.mxu0 %v292
  %373 = vmatprep.subr.bf16.mxu0 0
  %374 = vmatpush1.bf16.msra.mxu0 %v293
  %375 = vmatprep.subr.bf16.mxu0 0
  %376 = vmatpush1.bf16.msra.mxu0 %v294
  %377 = vmatprep.subr.bf16.mxu0 0
  %378 = vmatpush1.bf16.msra.mxu0 %v295
  %379 = vmatprep.subr.bf16.mxu0 0
  %380 = vmatpush1.bf16.msra.mxu0 %v296
  %381 = vmatprep.subr.bf16.mxu0 0
  %382 = vmatpush1.bf16.msra.mxu0 %v297
  %383 = vmatprep.subr.bf16.mxu0 0
  %384 = vmatpush1.bf16.msra.mxu0 %v298
  %385 = vmatprep.subr.bf16.mxu0 0
  %386 = vmatpush1.bf16.msra.mxu0 %v299
  %387 = vmatprep.subr.bf16.mxu0 0
  %388 = vmatpush1.bf16.msra.mxu0 %v300
  %389 = vmatprep.subr.bf16.mxu0 0
  %390 = vmatpush1.bf16.msra.mxu0 %v301
  %391 = vmatprep.subr.bf16.mxu0 0
  %392 = vmatpush1.bf16.msra.mxu0 %v302
  %393 = vmatprep.subr.bf16.mxu0 0
  %394 = vmatpush1.bf16.msra.mxu0 %v303
  %395 = vmatprep.subr.bf16.mxu0 0
  %396 = vmatpush1.bf16.msra.mxu0 %v304
  %397 = vmatprep.mubr.bf16.mxu0 %v138
  %398 = vmatmul.mubr.bf16.gmra.mrb[0].mxu0 %v124
  %v399 = vpop.f32.mrb[0].mxu0
  %v400 = vadd.f32 %v99, %v399
  %v401 = vpop.f32.mrb[0].mxu0
  %v402 = vpop.f32.mrb[0].mxu0
  %v403 = vpop.f32.mrb[0].mxu0
  %404 = vdwg.mxu0
  %405 = vmatprep.subr.bf16.mxu0 0
  %406 = vmatpush1.bf16.msra.mxu0 %v305
  %407 = vmatprep.subr.bf16.mxu0 0
  %408 = vmatpush1.bf16.msra.mxu0 %v306
  %409 = vmatprep.subr.bf16.mxu0 0
  %410 = vmatpush1.bf16.msra.mxu0 %v307
  %411 = vmatprep.subr.bf16.mxu0 0
  %412 = vmatpush1.bf16.msra.mxu0 %v308
  %413 = vmatprep.subr.bf16.mxu0 0
  %414 = vmatpush1.bf16.msra.mxu0 %v309
  %415 = vmatprep.subr.bf16.mxu0 0
  %416 = vmatpush1.bf16.msra.mxu0 %v310
  %417 = vmatprep.subr.bf16.mxu0 0
  %418 = vmatpush1.bf16.msra.mxu0 %v311
  %419 = vmatprep.subr.bf16.mxu0 0
  %420 = vmatpush1.bf16.msra.mxu0 %v312
  %421 = vmatprep.subr.bf16.mxu0 0
  %422 = vmatpush1.bf16.msra.mxu0 %v313
  %423 = vmatprep.subr.bf16.mxu0 0
  %424 = vmatpush1.bf16.msra.mxu0 %v314
  %425 = vmatprep.subr.bf16.mxu0 0
  %426 = vmatpush1.bf16.msra.mxu0 %v315
  %427 = vmatprep.subr.bf16.mxu0 0
  %428 = vmatpush1.bf16.msra.mxu0 %v316
  %429 = vmatprep.subr.bf16.mxu0 0
  %430 = vmatpush1.bf16.msra.mxu0 %v317
  %431 = vmatprep.subr.bf16.mxu0 0
  %432 = vmatpush1.bf16.msra.mxu0 %v318
  %433 = vmatprep.subr.bf16.mxu0 0
  %434 = vmatpush1.bf16.msra.mxu0 %v319
  %435 = vmatprep.subr.bf16.mxu0 0
  %436 = vmatpush1.bf16.msra.mxu0 %v320
  %437 = vmatprep.mubr.bf16.mxu0 %v140
  %438 = vmatmul.mubr.bf16.gmra.mrb[0].mxu0 %v139
  %v439 = vpop.f32.mrb[0].mxu0
  %v440 = vadd.f32 %v400, %v439
  %v441 = vpop.f32.mrb[0].mxu0
  %v442 = vpop.f32.mrb[0].mxu0
  %v443 = vpop.f32.mrb[0].mxu0
  %444 = vdwg.mxu0
  %445 = vmatprep.subr.bf16.mxu0 0
  %446 = vmatpush1.bf16.msra.mxu0 %v321
  %447 = vmatprep.subr.bf16.mxu0 0
  %448 = vmatpush1.bf16.msra.mxu0 %v322
  %449 = vmatprep.subr.bf16.mxu0 0
  %450 = vmatpush1.bf16.msra.mxu0 %v323
  %451 = vmatprep.subr.bf16.mxu0 0
  %452 = vmatpush1.bf16.msra.mxu0 %v324
  %453 = vmatprep.subr.bf16.mxu0 0
  %454 = vmatpush1.bf16.msra.mxu0 0
  %455 = vmatprep.subr.bf16.mxu0 0
  %456 = vmatpush1.bf16.msra.mxu0 0
  %457 = vmatprep.subr.bf16.mxu0 0
  %458 = vmatpush1.bf16.msra.mxu0 0
  %459 = vmatprep.subr.bf16.mxu0 0
  %460 = vmatpush1.bf16.msra.mxu0 0
  %461 = vmatprep.subr.bf16.mxu0 0
  %462 = vmatpush1.bf16.msra.mxu0 0
  %463 = vmatprep.subr.bf16.mxu0 0
  %464 = vmatpush1.bf16.msra.mxu0 0
  %465 = vmatprep.subr.bf16.mxu0 0
  %466 = vmatpush1.bf16.msra.mxu0 0
  %467 = vmatprep.subr.bf16.mxu0 0
  %468 = vmatpush1.bf16.msra.mxu0 0
  %469 = vmatprep.subr.bf16.mxu0 0
  %470 = vmatpush1.bf16.msra.mxu0 0
  %471 = vmatprep.subr.bf16.mxu0 0
  %472 = vmatpush1.bf16.msra.mxu0 0
  %473 = vmatprep.subr.bf16.mxu0 0
  %474 = vmatpush1.bf16.msra.mxu0 0
  %475 = vmatprep.subr.bf16.mxu0 0
  %476 = vmatpush1.bf16.msra.mxu0 0
  %477 = vmatprep.mubr.bf16.mxu0 0
  %478 = vmatmul.mubr.bf16.gmra.mrb[0].mxu0 %v363
  %v479 = vpop.f32.mrb[0].mxu0
  %v480 = vadd.f32 %v440, %v479
  %v481 = vpop.f32.mrb[0].mxu0
  %v482 = vpop.f32.mrb[0].mxu0
  %v483 = vpop.f32.mrb[0].mxu0
  %484 = vdwg.mxu0
  %vm485 = vcmp.ge.f32.partialorder %v480, 0.0
  %v486 = vmul.f32 %v480, 0.2
  %v487 = vsel %vm485, %v480, %v486
  %v488 = vld [vmem:[%s3] sm:$0x1]
  %v490 = vlaneseq
  %v491 = vshrl.u32 %v490, 7
  %v492 = vsub.s32 0, %v491
  %v493 = vrot.slane %v488, %v492
  %v495 = vmul.f32 %v487, %v493
  %v496 = vld [vmem:[%s4] sm:$0x1]
  %v498 = vlaneseq
  %v499 = vshrl.u32 %v498, 7
  %v500 = vsub.s32 0, %v499
  %v501 = vrot.slane %v496, %v500
  %v503 = vadd.f32 %v495, %v501
  %504 = vst [vmem:[%s5] sm:$0x3] %v503
  // Predicated region
  $region22: #{discriminator_forward.8} parent=0 // pred_check
    _
  $region23: #{discriminator_forward.8} parent=0 // pred_check_branch
    %506 = sbr.rel (0) target = $region25
  $region24: #{discriminator_forward.8} parent=0 // pred_region
    _
  $region25: #{discriminator_forward.8} parent=0 // pred_fallthru
    _
  // Predicated region
  $region26: #{discriminator_forward.8} parent=0 // pred_check
    _
  $region27: #{discriminator_forward.8} parent=0 // pred_check_branch
    %508 = sbr.rel (0) target = $region29
  $region28: #{discriminator_forward.8} parent=0 // pred_region
    _
  $region29: #{discriminator_forward.8} parent=0 // pred_fallthru
    _

</llo_original>
